<compile_context>
chip_gen: v7x
topology: tpu7x:2x2x1
jax: 0.10.0
libtpu: 0.0.40
codegen_flags: <defaults>
</compile_context>

<pallas_src>
import functools

import jax
import jax.numpy as jnp
from jax.experimental import pallas as pl
from jax.experimental.pallas import tpu as pltpu

EMBEDDING_SIZE = 50
NUM_FEATURES = 2
HIDDEN_SIZE = 128
EPAD = 64  # numeric-branch width (50) padded to a sublane-friendly 64
CATEGORICAL_COLS = ["Agencia_ID", "Canal_ID", "Ruta_SAK", "Cliente_ID", "Producto_ID"]


def _round_up(x, m):
    return (x + m - 1) // m * m


# ----------------------------- Pallas kernel ------------------------------- #
def _mlp_kernel(
    idx_ref,    # [C, TB]  int32  raw categorical indices (batch on lanes)
    xnum_ref,   # [F, TB]  f32    numeric features (batch on lanes)
    w1f_ref,    # [H, Vp+EPAD] bf16  fused fc1 weight (folded emb | numeric slice)
    wnum_ref,   # [EPAD, F] f32   num_layer weight  (out, in), rows 50..63 zero
    bnum_ref,   # [EPAD, 1] f32
    b1_ref,     # [H, 1]   f32
    w2_ref,     # [H, H]   bf16   (out, in)
    b2_ref,     # [H, 1]   f32
    w3_ref,     # [1, H]   bf16   (out, in)
    b3_ref,     # [1, 1]   f32
    out_ref,    # [1, TB]  f32    lane-dense output row
    *, vocab_sizes, epad,
):
    f32 = jnp.float32
    bf16 = jnp.bfloat16

    ncat, tile_b = idx_ref.shape
    nf = xnum_ref.shape[0]
    vp = w1f_ref.shape[1] - epad

    # compile-time offsets into the stacked (concatenated) vocabulary
    offsets, off = [], 0
    for v in vocab_sizes:
        offsets.append(off)
        off += v

    # ---- fused embedding lookup (one-hot build, clip + offset in-kernel) ----
    iota_v = jax.lax.broadcasted_iota(jnp.int32, (vp, tile_b), 0)
    hot = None
    for j in range(ncat):
        row = jnp.clip(idx_ref[j:j + 1, :], 0, vocab_sizes[j] - 1) + offsets[j]
        eq = iota_v == row                                   # [Vp, TB] bool
        hot = eq if hot is None else jnp.logical_or(hot, eq)
    onehot = hot.astype(bf16)                                # [Vp, TB]

    # ---- numeric branch: relu(num_layer(x_num)) on the VPU ------------------
    xnum = xnum_ref[...]                                     # [F, TB]
    wnum = wnum_ref[...]                                     # [EPAD, F]
    acc = wnum[:, 0:1] * xnum[0:1, :]
    for f in range(1, nf):
        acc = acc + wnum[:, f:f + 1] * xnum[f:f + 1, :]
    h_num = jnp.maximum(acc + bnum_ref[...], 0.0)            # [EPAD, TB] f32

    # ---- single fused fc1 matmul + relu -------------------------------------
    x_in = jnp.concatenate([onehot, h_num.astype(bf16)], axis=0)  # [Vp+EPAD, TB]
    h1 = jnp.dot(w1f_ref[...], x_in, preferred_element_type=f32)   # [H, TB]
    h1 = jnp.maximum(h1 + b1_ref[...], 0.0)

    # ---- fc2 + relu ----------------------------------------------------------
    h2 = jnp.dot(w2_ref[...], h1.astype(bf16), preferred_element_type=f32)
    h2 = jnp.maximum(h2 + b2_ref[...], 0.0)                  # [H, TB]

    # ---- fc3 -> lane-dense row -----------------------------------------------
    out = jnp.dot(w3_ref[...], h2.astype(bf16),
                  preferred_element_type=f32) + b3_ref[...]  # [1, TB]
    out_ref[...] = out.astype(out_ref.dtype)


# ------------------------------ forward wrapper ----------------------------- #
@functools.partial(jax.jit, static_argnames=("vocab_sizes", "tile_b"))
def simple_model_forward(kparams, x_cat, x_num, *, vocab_sizes, tile_b=4096):
    """x_cat: int32 [5, B] (one row per categorical column), x_num: f32 [B, 2]."""
    ncat, B = x_cat.shape
    nf = x_num.shape[1]
    H = kparams["w2_t"].shape[0]
    KW = kparams["w1f_t"].shape[1]          # Vp + EPAD
    vp = KW - EPAD

    idx = x_cat.astype(jnp.int32)           # no clip/offset/pad here (in-kernel)
    xnum_t = x_num.astype(jnp.float32).T    # [F, B] — tiny (8 B/row)

    # Tile: keep >= 2 grid steps when possible (feeds both v7x TensorCores),
    # lane width a multiple of 128; default 4096 keeps per-step overhead <10%.
    tb = max(128, min(tile_b, _round_up(pl.cdiv(B, 2), 128)))
    nb = pl.cdiv(B, tb)

    weights = (
        kparams["w1f_t"], kparams["wnum_t"], kparams["bnum_t"], kparams["b1_t"],
        kparams["w2_t"], kparams["b2_t"], kparams["w3_t"], kparams["b3"],
    )

    # VMEM budget: rough per-element live bytes * tile + resident weights, with
    # headroom.  Raised past v5e's 16 MiB default; capped at 64 MiB (v7x VMEM).
    per_elem = ((ncat * 4 + nf * 4 + 4) * 2      # streamed blocks, double-buffered
                + vp * (4 + 1 + 2)               # iota + hot + onehot
                + KW * 2                         # x_in (bf16)
                + EPAD * 8 + H * 12 + 64)        # h_num, h1/h2 + casts, slack
    wbytes = sum(int(w.size) * w.dtype.itemsize for w in weights)
    vmem_budget = int(min(max(2 * (per_elem * tb + 2 * wbytes), 32 << 20), 64 << 20))

    flops_per_row = 2 * H * KW + 2 * H * H + 2 * H + 2 * EPAD * nf
    cost = pl.CostEstimate(
        flops=int(flops_per_row * B),
        transcendentals=0,
        bytes_accessed=int(B * (ncat * 4 + nf * 4 + 4) + wbytes),
    )

    kernel = functools.partial(_mlp_kernel, vocab_sizes=vocab_sizes, epad=EPAD)

    out = pl.pallas_call(
        kernel,
        out_shape=jax.ShapeDtypeStruct((1, B), jnp.float32),
        grid=(nb,),
        in_specs=[pl.BlockSpec((ncat, tb), lambda i: (0, i)),
                  pl.BlockSpec((nf, tb), lambda i: (0, i))]
                 + [pl.BlockSpec(w.shape, lambda i: (0, 0)) for w in weights],
        out_specs=pl.BlockSpec((1, tb), lambda i: (0, i)),
        compiler_params=pltpu.CompilerParams(
            dimension_semantics=("parallel",),
            vmem_limit_bytes=vmem_budget),
        cost_estimate=cost,
    )(idx, xnum_t, *weights)

    return out[0]                            # .squeeze(-1) of the per-row fc3 output


# --------------------------- parameter creation ----------------------------- #
def init_params(key, num_unique_vals, hidden_size=HIDDEN_SIZE,
                num_features=NUM_FEATURES):
    """Synthetic init mirroring the PyTorch module's shapes (weights as [in,out])."""
    E = EMBEDDING_SIZE
    n_cat = len(num_unique_vals)
    keys = jax.random.split(key, n_cat + 8)

    emb_tables = [
        jax.random.normal(keys[i], (num_unique_vals[col], E), jnp.float32)
        for i, col in enumerate(CATEGORICAL_COLS)
    ]

    def linear(kw, kb, fan_in, fan_out):
        bound = 1.0 / jnp.sqrt(fan_in)
        w = jax.random.uniform(kw, (fan_in, fan_out), jnp.float32, -bound, bound)
        b = jax.random.uniform(kb, (1, fan_out), jnp.float32, -bound, bound)
        return w, b

    k = n_cat
    w_num, b_num = linear(keys[k + 0], keys[k + 1], num_features, E)
    w1, b1 = linear(keys[k + 2], keys[k + 3], E * n_cat + E, hidden_size)
    w2, b2 = linear(keys[k + 4], keys[k + 5], hidden_size, hidden_size)
    w3, b3 = linear(keys[k + 6], keys[k + 7], hidden_size, 1)

    return {
        "emb": emb_tables,
        "w_num": w_num, "b_num": b_num,
        # split fc1 weight: first 250 input rows for embeddings, last 50 for x_num
        "w1a": w1[: E * n_cat, :], "w1b": w1[E * n_cat:, :], "b1": b1,
        "w2": w2, "b2": b2,
        "w3": w3, "b3": b3,
    }


def prepare_kernel_params(params):
    """Fold embedding tables into fc1, fuse with the numeric fc1 slice, transpose
    to batch-on-lanes layout, cast matmul weights to bf16. Done once offline."""
    E = EMBEDDING_SIZE
    w1a = params["w1a"]                                      # [250, H] f32
    ms = []
    for j, tbl in enumerate(params["emb"]):
        ms.append(tbl.astype(jnp.float32) @ w1a[j * E:(j + 1) * E, :])   # [V_j, H]
    m_cat = jnp.concatenate(ms, axis=0)                      # [sum_V, H]
    vp = _round_up(m_cat.shape[0], 128)                      # lane/pack-friendly pad
    m_cat = jnp.pad(m_cat, ((0, vp - m_cat.shape[0]), (0, 0)))

    w1b = jnp.pad(params["w1b"], ((0, EPAD - E), (0, 0)))    # [EPAD, H]
    w1f = jnp.concatenate([m_cat, w1b], axis=0)              # [Vp+EPAD, H]

    wnum = jnp.pad(params["w_num"].T, ((0, EPAD - E), (0, 0)))   # [EPAD, F]
    bnum = jnp.pad(params["b_num"].T, ((0, EPAD - E), (0, 0)))   # [EPAD, 1]

    return {
        "w1f_t": w1f.T.astype(jnp.bfloat16),                 # [H, Vp+EPAD]
        "wnum_t": wnum.astype(jnp.float32),                  # [EPAD, F]
        "bnum_t": bnum.astype(jnp.float32),                  # [EPAD, 1]
        "b1_t": params["b1"].T.astype(jnp.float32),          # [H, 1]
        "w2_t": params["w2"].T.astype(jnp.bfloat16),         # [H, H]
        "b2_t": params["b2"].T.astype(jnp.float32),          # [H, 1]
        "w3_t": params["w3"].T.astype(jnp.bfloat16),         # [1, H]
        "b3": params["b3"].astype(jnp.float32),              # [1, 1]
    }


# ------------------------------- reference ---------------------------------- #
def reference_forward(params, x_cat, x_num):
    """Faithful f32 re-implementation of the PyTorch forward."""
    emb = [jnp.take(params["emb"][i], jnp.clip(x_cat[i], 0), axis=0)
           for i in range(len(CATEGORICAL_COLS))]
    xc = jnp.concatenate(emb, axis=-1)
    hn = jax.nn.relu(x_num @ params["w_num"] + params["b_num"])
    x = jnp.concatenate([xc, hn], axis=-1)
    w1 = jnp.concatenate([params["w1a"], params["w1b"]], axis=0)
    h1 = jax.nn.relu(x @ w1 + params["b1"])
    h2 = jax.nn.relu(h1 @ params["w2"] + params["b2"])
    return (h2 @ params["w3"] + params["b3"])[:, 0]


# --------------------------------- main -------------------------------------- #
if __name__ == "__main__":
    key = jax.random.PRNGKey(0)
    k_param, k_cat, k_num = jax.random.split(key, 3)

    batch = 300        # not a multiple of the tile -> exercises partial blocks
    num_unique_vals = {
        "Agencia_ID": 10, "Canal_ID": 7, "Ruta_SAK": 12,
        "Cliente_ID": 20, "Producto_ID": 15,
    }
    vocab_sizes = tuple(num_unique_vals[c] for c in CATEGORICAL_COLS)

    params = init_params(k_param, num_unique_vals)
    kparams = prepare_kernel_params(params)

    # x_cat: one int index vector per categorical column (includes -1 to
    # exercise the .clip(0) behavior); kept within vocab like real data.
    maxes = jnp.array(vocab_sizes, dtype=jnp.int32)[:, None]
    x_cat = jax.random.randint(k_cat, (len(CATEGORICAL_COLS), batch), -1, 6,
                               dtype=jnp.int32)
    x_cat = jnp.minimum(x_cat, maxes - 1)
    x_num = jax.random.normal(k_num, (batch, NUM_FEATURES), jnp.float32)

    # default tile_b=4096; the wrapper shrinks it to 256 here so the small test
    # still runs a 2-step grid with a partial final block.
    out = simple_model_forward(kparams, x_cat, x_num, vocab_sizes=vocab_sizes)
    out = jax.block_until_ready(out)

    ref = reference_forward(params, x_cat, x_num)
    assert out.shape == (batch,)
    # kernel uses bf16 weights / f32 accumulation -> compare against the f32
    # reference with a bf16-appropriate tolerance.
    assert jnp.allclose(out, ref, atol=5e-2, rtol=5e-2), (
        float(jnp.max(jnp.abs(out - ref))), out[:4], ref[:4])

    print("KERNEL_OK")
</pallas_src>

<mosaic_0001>
module attributes {stable_mosaic.version = 11 : i64} {
  func.func @_mlp_kernel(%arg0: i32, %arg1: memref<5x256xi32, #tpu.memory_space<vmem>>, %arg2: memref<2x256xf32, #tpu.memory_space<vmem>>, %arg3: memref<128x192xbf16, #tpu.memory_space<vmem>>, %arg4: memref<64x2xf32, #tpu.memory_space<vmem>>, %arg5: memref<64x1xf32, #tpu.memory_space<vmem>>, %arg6: memref<128x1xf32, #tpu.memory_space<vmem>>, %arg7: memref<128x128xbf16, #tpu.memory_space<vmem>>, %arg8: memref<128x1xf32, #tpu.memory_space<vmem>>, %arg9: memref<1x128xbf16, #tpu.memory_space<vmem>>, %arg10: memref<1x1xf32, #tpu.memory_space<vmem>>, %arg11: memref<1x256xf32, #tpu.memory_space<vmem>>) attributes {dimension_semantics = [#tpu.dimension_semantics<parallel>], iteration_bounds = array<i64: 2>, scalar_prefetch = 0 : i64, scratch_operands = 0 : i64, tpu.core_type = #tpu.core_type<tc>, window_params = [{transform_indices = @transform_0, window_bounds = array<i64: 5, 256>}, {transform_indices = @transform_1, window_bounds = array<i64: 2, 256>}, {pipeline_mode = #tpu.pipeline_mode<synchronous>, transform_indices = @transform_2, window_bounds = array<i64: 128, 192>}, {pipeline_mode = #tpu.pipeline_mode<synchronous>, transform_indices = @transform_3, window_bounds = array<i64: 64, 2>}, {pipeline_mode = #tpu.pipeline_mode<synchronous>, transform_indices = @transform_4, window_bounds = array<i64: 64, 1>}, {pipeline_mode = #tpu.pipeline_mode<synchronous>, transform_indices = @transform_5, window_bounds = array<i64: 128, 1>}, {pipeline_mode = #tpu.pipeline_mode<synchronous>, transform_indices = @transform_6, window_bounds = array<i64: 128, 128>}, {pipeline_mode = #tpu.pipeline_mode<synchronous>, transform_indices = @transform_7, window_bounds = array<i64: 128, 1>}, {pipeline_mode = #tpu.pipeline_mode<synchronous>, transform_indices = @transform_8, window_bounds = array<i64: 1, 128>}, {pipeline_mode = #tpu.pipeline_mode<synchronous>, transform_indices = @transform_9, window_bounds = array<i64: 1, 1>}, {transform_indices = @transform_10, window_bounds = array<i64: 1, 256>}]} {
    %0 = tpu.iota {dimensions = array<i32: 0>} : vector<128x256xi32>
    %c0 = arith.constant 0 : index
    %c0_0 = arith.constant 0 : index
    %1 = vector.load %arg1[%c0, %c0_0] : memref<5x256xi32, #tpu.memory_space<vmem>>, vector<1x256xi32>
    %c0_i32 = arith.constant 0 : i32
    %c9_i32 = arith.constant 9 : i32
    %2 = vector.broadcast %c0_i32 : i32 to vector<1x256xi32>
    %3 = arith.maxsi %2, %1 : vector<1x256xi32>
    %4 = vector.broadcast %c9_i32 : i32 to vector<1x256xi32>
    %5 = arith.minsi %4, %3 : vector<1x256xi32>
    %c0_i32_1 = arith.constant 0 : i32
    %6 = vector.broadcast %c0_i32_1 : i32 to vector<1x256xi32>
    %7 = arith.addi %5, %6 : vector<1x256xi32>
    %8 = vector.broadcast %7 : vector<1x256xi32> to vector<128x256xi32>
    %9 = arith.cmpi eq, %0, %8 : vector<128x256xi32>
    %c1 = arith.constant 1 : index
    %c0_2 = arith.constant 0 : index
    %10 = vector.load %arg1[%c1, %c0_2] : memref<5x256xi32, #tpu.memory_space<vmem>>, vector<1x256xi32>
    %c0_i32_3 = arith.constant 0 : i32
    %c6_i32 = arith.constant 6 : i32
    %11 = vector.broadcast %c0_i32_3 : i32 to vector<1x256xi32>
    %12 = arith.maxsi %11, %10 : vector<1x256xi32>
    %13 = vector.broadcast %c6_i32 : i32 to vector<1x256xi32>
    %14 = arith.minsi %13, %12 : vector<1x256xi32>
    %c10_i32 = arith.constant 10 : i32
    %15 = vector.broadcast %c10_i32 : i32 to vector<1x256xi32>
    %16 = arith.addi %14, %15 : vector<1x256xi32>
    %17 = vector.broadcast %16 : vector<1x256xi32> to vector<128x256xi32>
    %18 = arith.cmpi eq, %0, %17 : vector<128x256xi32>
    %19 = arith.ori %9, %18 : vector<128x256xi1>
    %c2 = arith.constant 2 : index
    %c0_4 = arith.constant 0 : index
    %20 = vector.load %arg1[%c2, %c0_4] : memref<5x256xi32, #tpu.memory_space<vmem>>, vector<1x256xi32>
    %c0_i32_5 = arith.constant 0 : i32
    %c11_i32 = arith.constant 11 : i32
    %21 = vector.broadcast %c0_i32_5 : i32 to vector<1x256xi32>
    %22 = arith.maxsi %21, %20 : vector<1x256xi32>
    %23 = vector.broadcast %c11_i32 : i32 to vector<1x256xi32>
    %24 = arith.minsi %23, %22 : vector<1x256xi32>
    %c17_i32 = arith.constant 17 : i32
    %25 = vector.broadcast %c17_i32 : i32 to vector<1x256xi32>
    %26 = arith.addi %24, %25 : vector<1x256xi32>
    %27 = vector.broadcast %26 : vector<1x256xi32> to vector<128x256xi32>
    %28 = arith.cmpi eq, %0, %27 : vector<128x256xi32>
    %29 = arith.ori %19, %28 : vector<128x256xi1>
    %c3 = arith.constant 3 : index
    %c0_6 = arith.constant 0 : index
    %30 = vector.load %arg1[%c3, %c0_6] : memref<5x256xi32, #tpu.memory_space<vmem>>, vector<1x256xi32>
    %c0_i32_7 = arith.constant 0 : i32
    %c19_i32 = arith.constant 19 : i32
    %31 = vector.broadcast %c0_i32_7 : i32 to vector<1x256xi32>
    %32 = arith.maxsi %31, %30 : vector<1x256xi32>
    %33 = vector.broadcast %c19_i32 : i32 to vector<1x256xi32>
    %34 = arith.minsi %33, %32 : vector<1x256xi32>
    %c29_i32 = arith.constant 29 : i32
    %35 = vector.broadcast %c29_i32 : i32 to vector<1x256xi32>
    %36 = arith.addi %34, %35 : vector<1x256xi32>
    %37 = vector.broadcast %36 : vector<1x256xi32> to vector<128x256xi32>
    %38 = arith.cmpi eq, %0, %37 : vector<128x256xi32>
    %39 = arith.ori %29, %38 : vector<128x256xi1>
    %c4 = arith.constant 4 : index
    %c0_8 = arith.constant 0 : index
    %40 = vector.load %arg1[%c4, %c0_8] : memref<5x256xi32, #tpu.memory_space<vmem>>, vector<1x256xi32>
    %c0_i32_9 = arith.constant 0 : i32
    %c14_i32 = arith.constant 14 : i32
    %41 = vector.broadcast %c0_i32_9 : i32 to vector<1x256xi32>
    %42 = arith.maxsi %41, %40 : vector<1x256xi32>
    %43 = vector.broadcast %c14_i32 : i32 to vector<1x256xi32>
    %44 = arith.minsi %43, %42 : vector<1x256xi32>
    %c49_i32 = arith.constant 49 : i32
    %45 = vector.broadcast %c49_i32 : i32 to vector<1x256xi32>
    %46 = arith.addi %44, %45 : vector<1x256xi32>
    %47 = vector.broadcast %46 : vector<1x256xi32> to vector<128x256xi32>
    %48 = arith.cmpi eq, %0, %47 : vector<128x256xi32>
    %49 = arith.ori %39, %48 : vector<128x256xi1>
    %50 = arith.extui %49 : vector<128x256xi1> to vector<128x256xi32>
    %51 = arith.sitofp %50 : vector<128x256xi32> to vector<128x256xf32>
    %52 = arith.truncf %51 : vector<128x256xf32> to vector<128x256xbf16>
    %c0_10 = arith.constant 0 : index
    %c0_11 = arith.constant 0 : index
    %53 = vector.load %arg2[%c0_10, %c0_11] : memref<2x256xf32, #tpu.memory_space<vmem>>, vector<2x256xf32>
    %c0_12 = arith.constant 0 : index
    %c0_13 = arith.constant 0 : index
    %54 = vector.load %arg4[%c0_12, %c0_13] : memref<64x2xf32, #tpu.memory_space<vmem>>, vector<64x2xf32>
    %55 = vector.extract_strided_slice %54 {offsets = [0, 0], sizes = [64, 1], strides = [1, 1]} : vector<64x2xf32> to vector<64x1xf32>
    %56 = vector.extract_strided_slice %53 {offsets = [0, 0], sizes = [1, 256], strides = [1, 1]} : vector<2x256xf32> to vector<1x256xf32>
    %57 = vector.broadcast %55 : vector<64x1xf32> to vector<64x256xf32>
    %58 = vector.broadcast %56 : vector<1x256xf32> to vector<64x256xf32>
    %59 = arith.mulf %57, %58 : vector<64x256xf32>
    %60 = vector.extract_strided_slice %54 {offsets = [0, 1], sizes = [64, 1], strides = [1, 1]} : vector<64x2xf32> to vector<64x1xf32>
    %61 = vector.extract_strided_slice %53 {offsets = [1, 0], sizes = [1, 256], strides = [1, 1]} : vector<2x256xf32> to vector<1x256xf32>
    %62 = vector.broadcast %60 : vector<64x1xf32> to vector<64x256xf32>
    %63 = vector.broadcast %61 : vector<1x256xf32> to vector<64x256xf32>
    %64 = arith.mulf %62, %63 : vector<64x256xf32>
    %65 = arith.addf %59, %64 : vector<64x256xf32>
    %c0_14 = arith.constant 0 : index
    %c0_15 = arith.constant 0 : index
    %66 = vector.load %arg5[%c0_14, %c0_15] : memref<64x1xf32, #tpu.memory_space<vmem>>, vector<64x1xf32>
    %67 = vector.broadcast %66 : vector<64x1xf32> to vector<64x256xf32>
    %68 = arith.addf %65, %67 : vector<64x256xf32>
    %cst = arith.constant 0.000000e+00 : f32
    %69 = vector.broadcast %cst : f32 to vector<64x256xf32>
    %70 = arith.maximumf %68, %69 : vector<64x256xf32>
    %71 = arith.truncf %70 : vector<64x256xf32> to vector<64x256xbf16>
    %72 = tpu.concatenate %52, %71 in 0 : vector<128x256xbf16>, vector<64x256xbf16> -> vector<192x256xbf16>
    %c0_16 = arith.constant 0 : index
    %c0_17 = arith.constant 0 : index
    %73 = vector.load %arg3[%c0_16, %c0_17] : memref<128x192xbf16, #tpu.memory_space<vmem>>, vector<128x192xbf16>
    %cst_18 = arith.constant dense<0.000000e+00> : vector<128x256xf32>
    %74 = tpu.matmul %73, %72, %cst_18 {dimension_numbers = #tpu.dot_dimension_numbers<[1], [0], [0], [1], [0, 0, 1, 1], [], []>} : vector<128x192xbf16>, vector<192x256xbf16>, vector<128x256xf32> -> vector<128x256xf32>
    %c0_19 = arith.constant 0 : index
    %c0_20 = arith.constant 0 : index
    %75 = vector.load %arg6[%c0_19, %c0_20] : memref<128x1xf32, #tpu.memory_space<vmem>>, vector<128x1xf32>
    %76 = vector.broadcast %75 : vector<128x1xf32> to vector<128x256xf32>
    %77 = arith.addf %74, %76 : vector<128x256xf32>
    %cst_21 = arith.constant 0.000000e+00 : f32
    %78 = vector.broadcast %cst_21 : f32 to vector<128x256xf32>
    %79 = arith.maximumf %77, %78 : vector<128x256xf32>
    %c0_22 = arith.constant 0 : index
    %c0_23 = arith.constant 0 : index
    %80 = vector.load %arg7[%c0_22, %c0_23] : memref<128x128xbf16, #tpu.memory_space<vmem>>, vector<128x128xbf16>
    %81 = arith.truncf %79 : vector<128x256xf32> to vector<128x256xbf16>
    %cst_24 = arith.constant dense<0.000000e+00> : vector<128x256xf32>
    %82 = tpu.matmul %80, %81, %cst_24 {dimension_numbers = #tpu.dot_dimension_numbers<[1], [0], [0], [1], [0, 0, 1, 1], [], []>} : vector<128x128xbf16>, vector<128x256xbf16>, vector<128x256xf32> -> vector<128x256xf32>
    %c0_25 = arith.constant 0 : index
    %c0_26 = arith.constant 0 : index
    %83 = vector.load %arg8[%c0_25, %c0_26] : memref<128x1xf32, #tpu.memory_space<vmem>>, vector<128x1xf32>
    %84 = vector.broadcast %83 : vector<128x1xf32> to vector<128x256xf32>
    %85 = arith.addf %82, %84 : vector<128x256xf32>
    %cst_27 = arith.constant 0.000000e+00 : f32
    %86 = vector.broadcast %cst_27 : f32 to vector<128x256xf32>
    %87 = arith.maximumf %85, %86 : vector<128x256xf32>
    %c0_28 = arith.constant 0 : index
    %c0_29 = arith.constant 0 : index
    %88 = vector.load %arg9[%c0_28, %c0_29] : memref<1x128xbf16, #tpu.memory_space<vmem>>, vector<1x128xbf16>
    %89 = arith.truncf %87 : vector<128x256xf32> to vector<128x256xbf16>
    %cst_30 = arith.constant dense<0.000000e+00> : vector<1x256xf32>
    %90 = tpu.matmul %88, %89, %cst_30 {dimension_numbers = #tpu.dot_dimension_numbers<[1], [0], [0], [1], [0, 0, 1, 1], [], []>} : vector<1x128xbf16>, vector<128x256xbf16>, vector<1x256xf32> -> vector<1x256xf32>
    %c0_31 = arith.constant 0 : index
    %c0_32 = arith.constant 0 : index
    %91 = vector.load %arg10[%c0_31, %c0_32] : memref<1x1xf32, #tpu.memory_space<vmem>>, vector<1x1xf32>
    %92 = vector.broadcast %91 : vector<1x1xf32> to vector<1x256xf32>
    %93 = arith.addf %90, %92 : vector<1x256xf32>
    %c0_33 = arith.constant 0 : index
    %c0_34 = arith.constant 0 : index
    %94 = vector.load %arg11[%c0_33, %c0_34] : memref<1x256xf32, #tpu.memory_space<vmem>>, vector<1x256xf32>
    tpu.vector_store %arg11[%c0_33, %c0_34], %93 {strides = array<i32>} : memref<1x256xf32, #tpu.memory_space<vmem>>, vector<1x256xf32>,
    return
  }
  func.func @transform_0(%arg0: i32) -> (i32, i32) {
    %c0_i32 = arith.constant 0 : i32
    %c0_i32_0 = arith.constant 0 : i32
    return %c0_i32, %arg0 : i32, i32
  }
  func.func @transform_1(%arg0: i32) -> (i32, i32) {
    %c0_i32 = arith.constant 0 : i32
    %c0_i32_0 = arith.constant 0 : i32
    return %c0_i32, %arg0 : i32, i32
  }
  func.func @transform_2(%arg0: i32) -> (i32, i32) {
    %c0_i32 = arith.constant 0 : i32
    %c0_i32_0 = arith.constant 0 : i32
    %c0_i32_1 = arith.constant 0 : i32
    return %c0_i32, %c0_i32_0 : i32, i32
  }
  func.func @transform_3(%arg0: i32) -> (i32, i32) {
    %c0_i32 = arith.constant 0 : i32
    %c0_i32_0 = arith.constant 0 : i32
    %c0_i32_1 = arith.constant 0 : i32
    return %c0_i32, %c0_i32_0 : i32, i32
  }
  func.func @transform_4(%arg0: i32) -> (i32, i32) {
    %c0_i32 = arith.constant 0 : i32
    %c0_i32_0 = arith.constant 0 : i32
    %c0_i32_1 = arith.constant 0 : i32
    return %c0_i32, %c0_i32_0 : i32, i32
  }
  func.func @transform_5(%arg0: i32) -> (i32, i32) {
    %c0_i32 = arith.constant 0 : i32
    %c0_i32_0 = arith.constant 0 : i32
    %c0_i32_1 = arith.constant 0 : i32
    return %c0_i32, %c0_i32_0 : i32, i32
  }
  func.func @transform_6(%arg0: i32) -> (i32, i32) {
    %c0_i32 = arith.constant 0 : i32
    %c0_i32_0 = arith.constant 0 : i32
    %c0_i32_1 = arith.constant 0 : i32
    return %c0_i32, %c0_i32_0 : i32, i32
  }
  func.func @transform_7(%arg0: i32) -> (i32, i32) {
    %c0_i32 = arith.constant 0 : i32
    %c0_i32_0 = arith.constant 0 : i32
    %c0_i32_1 = arith.constant 0 : i32
    return %c0_i32, %c0_i32_0 : i32, i32
  }
  func.func @transform_8(%arg0: i32) -> (i32, i32) {
    %c0_i32 = arith.constant 0 : i32
    %c0_i32_0 = arith.constant 0 : i32
    %c0_i32_1 = arith.constant 0 : i32
    return %c0_i32, %c0_i32_0 : i32, i32
  }
  func.func @transform_9(%arg0: i32) -> (i32, i32) {
    %c0_i32 = arith.constant 0 : i32
    %c0_i32_0 = arith.constant 0 : i32
    %c0_i32_1 = arith.constant 0 : i32
    return %c0_i32, %c0_i32_0 : i32, i32
  }
  func.func @transform_10(%arg0: i32) -> (i32, i32) {
    %c0_i32 = arith.constant 0 : i32
    %c0_i32_0 = arith.constant 0 : i32
    return %c0_i32, %arg0 : i32, i32
  }
}

</mosaic_0001>

<llo_original>
// kernel: simple_model_forward.1
$region0: #{simple_model_forward.1}
  #allocation0 [shape = 'u32[]', space=smem, size = 0x4, offset = 0x4, fixed_abs, tag = 'smem constant byte address 0x4 - core index']
  #allocation1 [shape = 'u32[144,128]{1,0:T(1,128)}', space=vmem, size = 0x12000, scoped, tag = 'internal scratch']
  #allocation2 [shape = 'f32[1,1]{1,0:T(1,128)S(1)}', space=vmem, size = 0x200, scoped, tag = 'scoped memory for simple_model_forward.1']
  %s0 = inlined_call_operand.vmem [shape: s32[5,300], index: 0, kind: input, shape index: {}]
  %s1 = inlined_call_operand.vmem [shape: f32[2,300], index: 1, kind: input, shape index: {}]
  %s2 = inlined_call_operand.vmem [shape: bf16[128,192], index: 2, kind: input, shape index: {}]
  %s3 = inlined_call_operand.vmem [shape: f32[64,2], index: 3, kind: input, shape index: {}]
  %s4 = inlined_call_operand.vmem [shape: f32[64,1], index: 4, kind: input, shape index: {}]
  %s5 = inlined_call_operand.vmem [shape: f32[128,1], index: 5, kind: input, shape index: {}]
  %s6 = inlined_call_operand.vmem [shape: bf16[128,128], index: 6, kind: input, shape index: {}]
  %s7 = inlined_call_operand.vmem [shape: f32[128,1], index: 7, kind: input, shape index: {}]
  %s8 = inlined_call_operand.vmem [shape: bf16[1,128], index: 8, kind: input, shape index: {}]
  %s9 = inlined_call_operand.<no memory space> [shape: f32[1,1], index: 9, kind: input, shape index: {}]
  %s10 = inlined_call_operand.vmem [shape: f32[1,300], index: 10, kind: output, shape index: {}]
  %s11 = sld [smem:[#allocation0]]
  $region135: #{simple_model_forward.1} parent=0
    _
  %s13 = ssub.s32 1, %s11
  %s14 = scalar_select 0, %s13, %s11
  %v15 = vstv %s9
  %16 = vst [vmem:[#allocation2] sm:$0x1] %v15
  $region1: #{simple_model_forward.1} parent=0
    #allocation3 [shape = 'u8[2048]{0}', space=vmem, size = 0x800, scoped, tag = 'output window, operand 0']
    loop: start=0, step=1, limit=4
    $region2: #{simple_model_forward.1} parent=1 // loop_pre_header
      _
    $region3: #{simple_model_forward.1} parent=1 // loop_header
      %s18 = sphi 0, %s22
      %p19 = scmp.ge.s32.totalorder %s18, 4
      %s28 = sphi 0, %s30
      %s31 = sphi 0, %s28
      %s32 = sphi 0, %s31
      %s48 = sphi 0, %s32
      %s54 = sphi 0, %s56
      %s57 = sphi 0, %s54
      %s58 = sphi 0, %s57
      %s74 = sphi 0, %s58
      %s78 = sphi 0, %s78
      %s80 = sphi 0, %s78
      %s81 = sphi 0, %s80
      %s95 = sphi 0, %s81
      %s99 = sphi 0, %s99
      %s101 = sphi 0, %s99
      %s102 = sphi 0, %s101
      %s116 = sphi 0, %s102
      %s120 = sphi 0, %s120
      %s122 = sphi 0, %s120
      %s123 = sphi 0, %s122
      %s137 = sphi 0, %s123
      %s141 = sphi 0, %s141
      %s143 = sphi 0, %s141
      %s144 = sphi 0, %s143
      %s158 = sphi 0, %s144
      %s162 = sphi 0, %s162
      %s164 = sphi 0, %s162
      %s165 = sphi 0, %s164
      %s179 = sphi 0, %s165
      %s183 = sphi 0, %s183
      %s185 = sphi 0, %s183
      %s186 = sphi 0, %s185
      %s200 = sphi 0, %s186
      %s204 = sphi 0, %s204
      %s206 = sphi 0, %s204
      %s207 = sphi 0, %s206
      %s221 = sphi 0, %s207
      %s225 = sphi 0, %s225
      %s227 = sphi 0, %s225
      %s228 = sphi 0, %s227
      %s242 = sphi 0, %s228
      %s248 = sphi 0, %s250
      %s251 = sphi 0, %s248
      %s252 = sphi 0, %s251
      %s268 = sphi 0, %s252
    $region4: #{simple_model_forward.1} parent=1 // loop_header_branch
      %21 = sbr.rel (%p19) target = $region8
    $region5: #{simple_model_forward.1} parent=1 // loop_body
      %s23 = ssub.s32 %s18, 1
      %s24 = ssub.s32 %s18, 2
      %s25 = sadd.s32 %s18, 1
      %s26 = ssub.s32 %s18, %s25
      %p27 = scmp.eq.s32.totalorder %s26, 0
      %s29 = sadd.s32 %s28, 1
      %s30 = scalar_select %p27, %s28, %s29
      %p33 = pneg %p27
      %p34 = scmp.eq.s32.totalorder %s18, 1
      %p35 = por %p33, %p34
      %p36 = scmp.ne.s32.totalorder %s28, %s31
      %p37 = scmp.eq.s32.totalorder %s18, 0
      %p38 = por %p36, %p37
      %p39 = scmp.ne.s32.totalorder %s28, %s31
      %p40 = scmp.eq.s32.totalorder %s23, 1
      %p41 = por %p39, %p40
      %p42 = scmp.ne.s32.totalorder %s31, %s32
      %p43 = scmp.eq.s32.totalorder %s23, 0
      %p44 = por %p42, %p43
      %p45 = scmp.ne.s32.totalorder %s31, %s32
      %p46 = scmp.eq.s32.totalorder %s24, 1
      %p47 = por %p45, %p46
      %p49 = scmp.ne.s32.totalorder %s32, %s48
      %p50 = scmp.eq.s32.totalorder %s24, 0
      %p51 = por %p49, %p50
      %s52 = ssub.s32 %s18, %s25
      %p53 = scmp.eq.s32.totalorder %s52, 0
      %s55 = sadd.s32 %s54, 1
      %s56 = scalar_select %p53, %s54, %s55
      %p59 = pneg %p53
      %p60 = scmp.eq.s32.totalorder %s18, 1
      %p61 = por %p59, %p60
      %p62 = scmp.ne.s32.totalorder %s54, %s57
      %p63 = scmp.eq.s32.totalorder %s18, 0
      %p64 = por %p62, %p63
      %p65 = scmp.ne.s32.totalorder %s54, %s57
      %p66 = scmp.eq.s32.totalorder %s23, 1
      %p67 = por %p65, %p66
      %p68 = scmp.ne.s32.totalorder %s57, %s58
      %p69 = scmp.eq.s32.totalorder %s23, 0
      %p70 = por %p68, %p69
      %p71 = scmp.ne.s32.totalorder %s57, %s58
      %p72 = scmp.eq.s32.totalorder %s24, 1
      %p73 = por %p71, %p72
      %p75 = scmp.ne.s32.totalorder %s58, %s74
      %p76 = scmp.eq.s32.totalorder %s24, 0
      %p77 = por %p75, %p76
      %s79 = sadd.s32 %s78, 1
      %p82 = scmp.eq.s32.totalorder %s18, 1
      %p83 = scmp.ne.s32.totalorder %s78, %s80
      %p84 = scmp.eq.s32.totalorder %s18, 0
      %p85 = por %p83, %p84
      %p86 = scmp.ne.s32.totalorder %s78, %s80
      %p87 = scmp.eq.s32.totalorder %s23, 1
      %p88 = por %p86, %p87
      %p89 = scmp.ne.s32.totalorder %s80, %s81
      %p90 = scmp.eq.s32.totalorder %s23, 0
      %p91 = por %p89, %p90
      %p92 = scmp.ne.s32.totalorder %s80, %s81
      %p93 = scmp.eq.s32.totalorder %s24, 1
      %p94 = por %p92, %p93
      %p96 = scmp.ne.s32.totalorder %s81, %s95
      %p97 = scmp.eq.s32.totalorder %s24, 0
      %p98 = por %p96, %p97
      %s100 = sadd.s32 %s99, 1
      %p103 = scmp.eq.s32.totalorder %s18, 1
      %p104 = scmp.ne.s32.totalorder %s99, %s101
      %p105 = scmp.eq.s32.totalorder %s18, 0
      %p106 = por %p104, %p105
      %p107 = scmp.ne.s32.totalorder %s99, %s101
      %p108 = scmp.eq.s32.totalorder %s23, 1
      %p109 = por %p107, %p108
      %p110 = scmp.ne.s32.totalorder %s101, %s102
      %p111 = scmp.eq.s32.totalorder %s23, 0
      %p112 = por %p110, %p111
      %p113 = scmp.ne.s32.totalorder %s101, %s102
      %p114 = scmp.eq.s32.totalorder %s24, 1
      %p115 = por %p113, %p114
      %p117 = scmp.ne.s32.totalorder %s102, %s116
      %p118 = scmp.eq.s32.totalorder %s24, 0
      %p119 = por %p117, %p118
      %s121 = sadd.s32 %s120, 1
      %p124 = scmp.eq.s32.totalorder %s18, 1
      %p125 = scmp.ne.s32.totalorder %s120, %s122
      %p126 = scmp.eq.s32.totalorder %s18, 0
      %p127 = por %p125, %p126
      %p128 = scmp.ne.s32.totalorder %s120, %s122
      %p129 = scmp.eq.s32.totalorder %s23, 1
      %p130 = por %p128, %p129
      %p131 = scmp.ne.s32.totalorder %s122, %s123
      %p132 = scmp.eq.s32.totalorder %s23, 0
      %p133 = por %p131, %p132
      %p134 = scmp.ne.s32.totalorder %s122, %s123
      %p135 = scmp.eq.s32.totalorder %s24, 1
      %p136 = por %p134, %p135
      %p138 = scmp.ne.s32.totalorder %s123, %s137
      %p139 = scmp.eq.s32.totalorder %s24, 0
      %p140 = por %p138, %p139
      %s142 = sadd.s32 %s141, 1
      %p145 = scmp.eq.s32.totalorder %s18, 1
      %p146 = scmp.ne.s32.totalorder %s141, %s143
      %p147 = scmp.eq.s32.totalorder %s18, 0
      %p148 = por %p146, %p147
      %p149 = scmp.ne.s32.totalorder %s141, %s143
      %p150 = scmp.eq.s32.totalorder %s23, 1
      %p151 = por %p149, %p150
      %p152 = scmp.ne.s32.totalorder %s143, %s144
      %p153 = scmp.eq.s32.totalorder %s23, 0
      %p154 = por %p152, %p153
      %p155 = scmp.ne.s32.totalorder %s143, %s144
      %p156 = scmp.eq.s32.totalorder %s24, 1
      %p157 = por %p155, %p156
      %p159 = scmp.ne.s32.totalorder %s144, %s158
      %p160 = scmp.eq.s32.totalorder %s24, 0
      %p161 = por %p159, %p160
      %s163 = sadd.s32 %s162, 1
      %p166 = scmp.eq.s32.totalorder %s18, 1
      %p167 = scmp.ne.s32.totalorder %s162, %s164
      %p168 = scmp.eq.s32.totalorder %s18, 0
      %p169 = por %p167, %p168
      %p170 = scmp.ne.s32.totalorder %s162, %s164
      %p171 = scmp.eq.s32.totalorder %s23, 1
      %p172 = por %p170, %p171
      %p173 = scmp.ne.s32.totalorder %s164, %s165
      %p174 = scmp.eq.s32.totalorder %s23, 0
      %p175 = por %p173, %p174
      %p176 = scmp.ne.s32.totalorder %s164, %s165
      %p177 = scmp.eq.s32.totalorder %s24, 1
      %p178 = por %p176, %p177
      %p180 = scmp.ne.s32.totalorder %s165, %s179
      %p181 = scmp.eq.s32.totalorder %s24, 0
      %p182 = por %p180, %p181
      %s184 = sadd.s32 %s183, 1
      %p187 = scmp.eq.s32.totalorder %s18, 1
      %p188 = scmp.ne.s32.totalorder %s183, %s185
      %p189 = scmp.eq.s32.totalorder %s18, 0
      %p190 = por %p188, %p189
      %p191 = scmp.ne.s32.totalorder %s183, %s185
      %p192 = scmp.eq.s32.totalorder %s23, 1
      %p193 = por %p191, %p192
      %p194 = scmp.ne.s32.totalorder %s185, %s186
      %p195 = scmp.eq.s32.totalorder %s23, 0
      %p196 = por %p194, %p195
      %p197 = scmp.ne.s32.totalorder %s185, %s186
      %p198 = scmp.eq.s32.totalorder %s24, 1
      %p199 = por %p197, %p198
      %p201 = scmp.ne.s32.totalorder %s186, %s200
      %p202 = scmp.eq.s32.totalorder %s24, 0
      %p203 = por %p201, %p202
      %s205 = sadd.s32 %s204, 1
      %p208 = scmp.eq.s32.totalorder %s18, 1
      %p209 = scmp.ne.s32.totalorder %s204, %s206
      %p210 = scmp.eq.s32.totalorder %s18, 0
      %p211 = por %p209, %p210
      %p212 = scmp.ne.s32.totalorder %s204, %s206
      %p213 = scmp.eq.s32.totalorder %s23, 1
      %p214 = por %p212, %p213
      %p215 = scmp.ne.s32.totalorder %s206, %s207
      %p216 = scmp.eq.s32.totalorder %s23, 0
      %p217 = por %p215, %p216
      %p218 = scmp.ne.s32.totalorder %s206, %s207
      %p219 = scmp.eq.s32.totalorder %s24, 1
      %p220 = por %p218, %p219
      %p222 = scmp.ne.s32.totalorder %s207, %s221
      %p223 = scmp.eq.s32.totalorder %s24, 0
      %p224 = por %p222, %p223
      %s226 = sadd.s32 %s225, 1
      %p229 = scmp.eq.s32.totalorder %s18, 1
      %p230 = scmp.ne.s32.totalorder %s225, %s227
      %p231 = scmp.eq.s32.totalorder %s18, 0
      %p232 = por %p230, %p231
      %p233 = scmp.ne.s32.totalorder %s225, %s227
      %p234 = scmp.eq.s32.totalorder %s23, 1
      %p235 = por %p233, %p234
      %p236 = scmp.ne.s32.totalorder %s227, %s228
      %p237 = scmp.eq.s32.totalorder %s23, 0
      %p238 = por %p236, %p237
      %p239 = scmp.ne.s32.totalorder %s227, %s228
      %p240 = scmp.eq.s32.totalorder %s24, 1
      %p241 = por %p239, %p240
      %p243 = scmp.ne.s32.totalorder %s228, %s242
      %p244 = scmp.eq.s32.totalorder %s24, 0
      %p245 = por %p243, %p244
      %s246 = ssub.s32 %s18, %s25
      %p247 = scmp.eq.s32.totalorder %s246, 0
      %s249 = sadd.s32 %s248, 1
      %s250 = scalar_select %p247, %s248, %s249
      %p253 = pneg %p247
      %p254 = scmp.eq.s32.totalorder %s18, 1
      %p255 = por %p253, %p254
      %p256 = scmp.ne.s32.totalorder %s248, %s251
      %p257 = scmp.eq.s32.totalorder %s18, 0
      %p258 = por %p256, %p257
      %p259 = scmp.ne.s32.totalorder %s248, %s251
      %p260 = scmp.eq.s32.totalorder %s23, 1
      %p261 = por %p259, %p260
      %p262 = scmp.ne.s32.totalorder %s251, %s252
      %p263 = scmp.eq.s32.totalorder %s23, 0
      %p264 = por %p262, %p263
      %p265 = scmp.ne.s32.totalorder %s251, %s252
      %p266 = scmp.eq.s32.totalorder %s24, 1
      %p267 = por %p265, %p266
      %p269 = scmp.ne.s32.totalorder %s252, %s268
      %p270 = scmp.eq.s32.totalorder %s24, 0
      %p271 = por %p269, %p270
      %p272 = scmp.le.s32.totalorder 1, %s18
      %p273 = scmp.lt.s32.totalorder %s18, 3
      %p274 = pnand %p272, %p273
      %p275 = pneg %p274
      // Predicated region
      $region9: #{simple_model_forward.1} parent=5 // pred_check
        _
      $region10: #{simple_model_forward.1} parent=5 // pred_check_branch
        %277 = sbr.rel (%p274) target = $region12
      $region11: #{simple_model_forward.1} parent=5 // pred_region
        %s278 = ssub.s32 %s18, 1
        // Predicated region
        $region13: #{simple_model_forward.1} parent=11 // pred_check
          %p279 = pneg %p91
        $region14: #{simple_model_forward.1} parent=11 // pred_check_branch
          %281 = sbr.rel (%p279) target = $region16
        $region15: #{simple_model_forward.1} parent=11 // pred_region
          _
        $region16: #{simple_model_forward.1} parent=11 // pred_fallthru
          _
        // Predicated region
        $region17: #{simple_model_forward.1} parent=11 // pred_check
          %p282 = pneg %p112
        $region18: #{simple_model_forward.1} parent=11 // pred_check_branch
          %284 = sbr.rel (%p282) target = $region20
        $region19: #{simple_model_forward.1} parent=11 // pred_region
          _
        $region20: #{simple_model_forward.1} parent=11 // pred_fallthru
          _
        // Predicated region
        $region21: #{simple_model_forward.1} parent=11 // pred_check
          %p285 = pneg %p133
        $region22: #{simple_model_forward.1} parent=11 // pred_check_branch
          %287 = sbr.rel (%p285) target = $region24
        $region23: #{simple_model_forward.1} parent=11 // pred_region
          _
        $region24: #{simple_model_forward.1} parent=11 // pred_fallthru
          _
        // Predicated region
        $region25: #{simple_model_forward.1} parent=11 // pred_check
          %p288 = pneg %p154
        $region26: #{simple_model_forward.1} parent=11 // pred_check_branch
          %290 = sbr.rel (%p288) target = $region28
        $region27: #{simple_model_forward.1} parent=11 // pred_region
          _
        $region28: #{simple_model_forward.1} parent=11 // pred_fallthru
          _
        // Predicated region
        $region29: #{simple_model_forward.1} parent=11 // pred_check
          %p291 = pneg %p175
        $region30: #{simple_model_forward.1} parent=11 // pred_check_branch
          %293 = sbr.rel (%p291) target = $region32
        $region31: #{simple_model_forward.1} parent=11 // pred_region
          _
        $region32: #{simple_model_forward.1} parent=11 // pred_fallthru
          _
        // Predicated region
        $region33: #{simple_model_forward.1} parent=11 // pred_check
          %p294 = pneg %p196
        $region34: #{simple_model_forward.1} parent=11 // pred_check_branch
          %296 = sbr.rel (%p294) target = $region36
        $region35: #{simple_model_forward.1} parent=11 // pred_region
          _
        $region36: #{simple_model_forward.1} parent=11 // pred_fallthru
          _
        // Predicated region
        $region37: #{simple_model_forward.1} parent=11 // pred_check
          %p297 = pneg %p217
        $region38: #{simple_model_forward.1} parent=11 // pred_check_branch
          %299 = sbr.rel (%p297) target = $region40
        $region39: #{simple_model_forward.1} parent=11 // pred_region
          _
        $region40: #{simple_model_forward.1} parent=11 // pred_fallthru
          _
        // Predicated region
        $region41: #{simple_model_forward.1} parent=11 // pred_check
          %p300 = pneg %p238
        $region42: #{simple_model_forward.1} parent=11 // pred_check_branch
          %302 = sbr.rel (%p300) target = $region44
        $region43: #{simple_model_forward.1} parent=11 // pred_region
          _
        $region44: #{simple_model_forward.1} parent=11 // pred_fallthru
          _
      $region12: #{simple_model_forward.1} parent=5 // pred_fallthru
        _
      %p303 = scmp.lt.s32.totalorder %s18, 2
      // Predicated region
      $region45: #{simple_model_forward.1} parent=5 // pred_check
        %p304 = pneg %p303
      $region46: #{simple_model_forward.1} parent=5 // pred_check_branch
        %306 = sbr.rel (%p304) target = $region48
      $region47: #{simple_model_forward.1} parent=5 // pred_region
        // Predicated region
        $region49: #{simple_model_forward.1} parent=47 // pred_check
          %p307 = pneg %p38
        $region50: #{simple_model_forward.1} parent=47 // pred_check_branch
          %309 = sbr.rel (%p307) target = $region52
        $region51: #{simple_model_forward.1} parent=47 // pred_region
          %s310 = smul.u32 2, %s18
          %s311 = ssub.s32 3, %s310
          %p312 = scmp.lt.s32.totalorder %s311, 2
          %s313 = scalar_select %p312, %s311, 2
          %s314 = smul.u32 128, %s313
          %p315 = scmp.lt.s32.totalorder %s310, 2
          %s316 = scalar_select %p315, %s310, 2
          %s317 = smul.addr %s316, 8
          %s318 = scalar_lea.vmem %s0, %s317
          %s319 = smul.u32 2, %s18
          %s320 = ssub.s32 3, %s319
          %p321 = scmp.lt.s32.totalorder %s320, 2
          %s322 = scalar_select %p321, %s320, 2
          %s323 = smul.u32 128, %s322
        $region52: #{simple_model_forward.1} parent=47 // pred_fallthru
          _
        // Predicated region
        $region53: #{simple_model_forward.1} parent=47 // pred_check
          %p324 = pneg %p64
        $region54: #{simple_model_forward.1} parent=47 // pred_check_branch
          %326 = sbr.rel (%p324) target = $region56
        $region55: #{simple_model_forward.1} parent=47 // pred_region
          %s327 = smul.u32 2, %s18
          %s328 = ssub.s32 3, %s327
          %p329 = scmp.lt.s32.totalorder %s328, 2
          %s330 = scalar_select %p329, %s328, 2
          %s331 = smul.u32 32, %s330
          %p332 = scmp.lt.s32.totalorder %s327, 2
          %s333 = scalar_select %p332, %s327, 2
          %s334 = smul.addr %s333, 2
          %s335 = scalar_lea.vmem %s1, %s334
          %s336 = smul.u32 2, %s18
          %s337 = ssub.s32 3, %s336
          %p338 = scmp.lt.s32.totalorder %s337, 2
          %s339 = scalar_select %p338, %s337, 2
          %s340 = smul.u32 32, %s339
        $region56: #{simple_model_forward.1} parent=47 // pred_fallthru
          _
      $region48: #{simple_model_forward.1} parent=5 // pred_fallthru
        _
      %p341 = scmp.le.s32.totalorder 1, %s18
      %p342 = scmp.lt.s32.totalorder %s18, 3
      %p343 = pnand %p341, %p342
      %p344 = pneg %p343
      // Predicated region
      $region57: #{simple_model_forward.1} parent=5 // pred_check
        _
      $region58: #{simple_model_forward.1} parent=5 // pred_check_branch
        %346 = sbr.rel (%p343) target = $region60
      $region59: #{simple_model_forward.1} parent=5 // pred_region
        %s347 = ssub.s32 %s18, 1
        %s348 = smul.u32 2, %s23
        %s349 = ssub.s32 3, %s348
        %p350 = scmp.lt.s32.totalorder %s349, 2
        %s351 = scalar_select %p350, %s349, 2
        %s352 = smul.u32 128, %s351
        %p353 = scmp.lt.s32.totalorder %s348, 2
        %s354 = scalar_select %p353, %s348, 2
        %s355 = smul.addr %s354, 8
        %s356 = scalar_lea.vmem %s0, %s355
        %p357 = pneg %p44
        %p358 = pneg %p41
        %s359 = smul.u32 2, %s23
        %s360 = ssub.s32 3, %s359
        %p361 = scmp.lt.s32.totalorder %s360, 2
        %s362 = scalar_select %p361, %s360, 2
        %s363 = smul.u32 32, %s362
        %p364 = scmp.lt.s32.totalorder %s359, 2
        %s365 = scalar_select %p364, %s359, 2
        %s366 = smul.addr %s365, 2
        %s367 = scalar_lea.vmem %s1, %s366
        %p368 = pneg %p70
        %p369 = pneg %p67
        %p370 = pneg %p91
        %p371 = pneg %p88
        %p372 = pneg %p112
        %p373 = pneg %p109
        %p374 = pneg %p133
        %p375 = pneg %p130
        %p376 = pneg %p154
        %p377 = pneg %p151
        %p378 = pneg %p175
        %p379 = pneg %p172
        %p380 = pneg %p196
        %p381 = pneg %p193
        %p382 = pneg %p217
        %p383 = pneg %p214
        %p384 = pneg %p238
        %p385 = pneg %p235
        %p386 = pneg %p264
        %p387 = pneg %p261
        %s388 = sand.u32 %s251, 1
        %s389 = sand.u32 %s251, 1
        %s390 = smul.addr %s389, 2
        %s391 = scalar_lea.vmem [#allocation3], %s390
        %s392 = smul.u32 2, %s23
        %s393 = ssub.s32 3, %s392
        %p394 = scmp.lt.s32.totalorder %s393, 2
        %s395 = scalar_select %p394, %s393, 2
        %s396 = smul.u32 128, %s395
        %p397 = scmp.lt.s32.totalorder %s392, 2
        %s398 = scalar_select %p397, %s392, 2
        %s399 = smul.addr %s398, 8
        %s400 = scalar_lea.vmem %s0, %s399
        %s401 = smul.u32 2, %s23
        %s402 = ssub.s32 3, %s401
        %p403 = scmp.lt.s32.totalorder %s402, 2
        %s404 = scalar_select %p403, %s402, 2
        %s405 = smul.u32 128, %s404
        %s406 = smul.u32 2, %s23
        %s407 = ssub.s32 3, %s406
        %p408 = scmp.lt.s32.totalorder %s407, 2
        %s409 = scalar_select %p408, %s407, 2
        %s410 = smul.u32 32, %s409
        %p411 = scmp.lt.s32.totalorder %s406, 2
        %s412 = scalar_select %p411, %s406, 2
        %s413 = smul.addr %s412, 2
        %s414 = scalar_lea.vmem %s1, %s413
        %s415 = smul.u32 2, %s23
        %s416 = ssub.s32 3, %s415
        %p417 = scmp.lt.s32.totalorder %s416, 2
        %s418 = scalar_select %p417, %s416, 2
        %s419 = smul.u32 32, %s418
        %s420 = smul.u32 2, %s23
        %s421 = ssub.s32 3, %s420
        %p422 = scmp.lt.s32.totalorder %s421, 2
        %s423 = scalar_select %p422, %s421, 2
        %s424 = smul.u32 16, %s423
        %v426 = vlaneseq
        %v427 = vshrl.u32 %v426, 7
        %v428 = vadd.s32 %v427, 8
        %v429 = vadd.s32 %v427, 16
        %v430 = vadd.s32 %v427, 24
        %v431 = vadd.s32 %v427, 32
        %v432 = vadd.s32 %v427, 40
        %v433 = vadd.s32 %v427, 48
        %v434 = vadd.s32 %v427, 56
        %v435 = vadd.s32 %v427, 64
        %v436 = vadd.s32 %v427, 72
        %v437 = vadd.s32 %v427, 80
        %v438 = vadd.s32 %v427, 88
        %v439 = vadd.s32 %v427, 96
        %v440 = vadd.s32 %v427, 104
        %v441 = vadd.s32 %v427, 112
        %v442 = vadd.s32 %v427, 120
        %v443 = vld [vmem:[%s400] ss:$8 sm:$0x3]
        %vm444 = vcmp.gt.s32.totalorder %v443, 0
        %v445 = vsel %vm444, %v443, 0
        %vm446 = vcmp.lt.s32.totalorder %v445, 9
        %v447 = vsel %vm446, %v445, 9
        %v448 = vlaneseq
        %v449 = vshrl.u32 %v448, 7
        %v450 = vsub.s32 0, %v449
        %v451 = vrot.slane %v447, %v450
        %v452 = vlaneseq
        %v453 = vshrl.u32 %v452, 7
        %v454 = vsub.s32 1, %v453
        %v455 = vrot.slane %v447, %v454
        %vm456 = vcmp.eq.s32.totalorder %v427, %v451
        %vm457 = vcmp.eq.s32.totalorder %v427, %v455
        %vm458 = vcmp.eq.s32.totalorder %v428, %v451
        %vm459 = vcmp.eq.s32.totalorder %v428, %v455
        %vm460 = vcmp.eq.s32.totalorder %v429, %v451
        %vm461 = vcmp.eq.s32.totalorder %v429, %v455
        %vm462 = vcmp.eq.s32.totalorder %v430, %v451
        %vm463 = vcmp.eq.s32.totalorder %v430, %v455
        %vm464 = vcmp.eq.s32.totalorder %v431, %v451
        %vm465 = vcmp.eq.s32.totalorder %v431, %v455
        %vm466 = vcmp.eq.s32.totalorder %v432, %v451
        %vm467 = vcmp.eq.s32.totalorder %v432, %v455
        %vm468 = vcmp.eq.s32.totalorder %v433, %v451
        %vm469 = vcmp.eq.s32.totalorder %v433, %v455
        %vm470 = vcmp.eq.s32.totalorder %v434, %v451
        %vm471 = vcmp.eq.s32.totalorder %v434, %v455
        %vm472 = vcmp.eq.s32.totalorder %v435, %v451
        %vm473 = vcmp.eq.s32.totalorder %v435, %v455
        %vm474 = vcmp.eq.s32.totalorder %v436, %v451
        %vm475 = vcmp.eq.s32.totalorder %v436, %v455
        %vm476 = vcmp.eq.s32.totalorder %v437, %v451
        %vm477 = vcmp.eq.s32.totalorder %v437, %v455
        %vm478 = vcmp.eq.s32.totalorder %v438, %v451
        %vm479 = vcmp.eq.s32.totalorder %v438, %v455
        %vm480 = vcmp.eq.s32.totalorder %v439, %v451
        %vm481 = vcmp.eq.s32.totalorder %v439, %v455
        %vm482 = vcmp.eq.s32.totalorder %v440, %v451
        %vm483 = vcmp.eq.s32.totalorder %v440, %v455
        %vm484 = vcmp.eq.s32.totalorder %v441, %v451
        %vm485 = vcmp.eq.s32.totalorder %v441, %v455
        %vm486 = vcmp.eq.s32.totalorder %v442, %v451
        %vm487 = vcmp.eq.s32.totalorder %v442, %v455
        %s488 = scalar_lea.vmem %s400, 1
        %v489 = vld [vmem:[%s488] ss:$8 sm:$0x3]
        %vm490 = vcmp.gt.s32.totalorder %v489, 0
        %v491 = vsel %vm490, %v489, 0
        %vm492 = vcmp.lt.s32.totalorder %v491, 6
        %v493 = vsel %vm492, %v491, 6
        %v494 = vadd.s32 %v493, 10
        %v495 = vlaneseq
        %v496 = vshrl.u32 %v495, 7
        %v497 = vsub.s32 0, %v496
        %v498 = vrot.slane %v494, %v497
        %v499 = vlaneseq
        %v500 = vshrl.u32 %v499, 7
        %v501 = vsub.s32 1, %v500
        %v502 = vrot.slane %v494, %v501
        %vm503 = vcmp.eq.s32.totalorder %v427, %v498
        %vm504 = vcmp.eq.s32.totalorder %v427, %v502
        %vm505 = vcmp.eq.s32.totalorder %v428, %v498
        %vm506 = vcmp.eq.s32.totalorder %v428, %v502
        %vm507 = vcmp.eq.s32.totalorder %v429, %v498
        %vm508 = vcmp.eq.s32.totalorder %v429, %v502
        %vm509 = vcmp.eq.s32.totalorder %v430, %v498
        %vm510 = vcmp.eq.s32.totalorder %v430, %v502
        %vm511 = vcmp.eq.s32.totalorder %v431, %v498
        %vm512 = vcmp.eq.s32.totalorder %v431, %v502
        %vm513 = vcmp.eq.s32.totalorder %v432, %v498
        %vm514 = vcmp.eq.s32.totalorder %v432, %v502
        %vm515 = vcmp.eq.s32.totalorder %v433, %v498
        %vm516 = vcmp.eq.s32.totalorder %v433, %v502
        %vm517 = vcmp.eq.s32.totalorder %v434, %v498
        %vm518 = vcmp.eq.s32.totalorder %v434, %v502
        %vm519 = vcmp.eq.s32.totalorder %v435, %v498
        %vm520 = vcmp.eq.s32.totalorder %v435, %v502
        %vm521 = vcmp.eq.s32.totalorder %v436, %v498
        %vm522 = vcmp.eq.s32.totalorder %v436, %v502
        %vm523 = vcmp.eq.s32.totalorder %v437, %v498
        %vm524 = vcmp.eq.s32.totalorder %v437, %v502
        %vm525 = vcmp.eq.s32.totalorder %v438, %v498
        %vm526 = vcmp.eq.s32.totalorder %v438, %v502
        %vm527 = vcmp.eq.s32.totalorder %v439, %v498
        %vm528 = vcmp.eq.s32.totalorder %v439, %v502
        %vm529 = vcmp.eq.s32.totalorder %v440, %v498
        %vm530 = vcmp.eq.s32.totalorder %v440, %v502
        %vm531 = vcmp.eq.s32.totalorder %v441, %v498
        %vm532 = vcmp.eq.s32.totalorder %v441, %v502
        %vm533 = vcmp.eq.s32.totalorder %v442, %v498
        %vm534 = vcmp.eq.s32.totalorder %v442, %v502
        %vm535 = vmor %vm456, %vm503
        %vm536 = vmor %vm457, %vm504
        %vm537 = vmor %vm458, %vm505
        %vm538 = vmor %vm459, %vm506
        %vm539 = vmor %vm460, %vm507
        %vm540 = vmor %vm461, %vm508
        %vm541 = vmor %vm462, %vm509
        %vm542 = vmor %vm463, %vm510
        %vm543 = vmor %vm464, %vm511
        %vm544 = vmor %vm465, %vm512
        %vm545 = vmor %vm466, %vm513
        %vm546 = vmor %vm467, %vm514
        %vm547 = vmor %vm468, %vm515
        %vm548 = vmor %vm469, %vm516
        %vm549 = vmor %vm470, %vm517
        %vm550 = vmor %vm471, %vm518
        %vm551 = vmor %vm472, %vm519
        %vm552 = vmor %vm473, %vm520
        %vm553 = vmor %vm474, %vm521
        %vm554 = vmor %vm475, %vm522
        %vm555 = vmor %vm476, %vm523
        %vm556 = vmor %vm477, %vm524
        %vm557 = vmor %vm478, %vm525
        %vm558 = vmor %vm479, %vm526
        %vm559 = vmor %vm480, %vm527
        %vm560 = vmor %vm481, %vm528
        %vm561 = vmor %vm482, %vm529
        %vm562 = vmor %vm483, %vm530
        %vm563 = vmor %vm484, %vm531
        %vm564 = vmor %vm485, %vm532
        %vm565 = vmor %vm486, %vm533
        %vm566 = vmor %vm487, %vm534
        %s567 = scalar_lea.vmem %s400, 2
        %v568 = vld [vmem:[%s567] ss:$8 sm:$0x3]
        %vm569 = vcmp.gt.s32.totalorder %v568, 0
        %v570 = vsel %vm569, %v568, 0
        %vm571 = vcmp.lt.s32.totalorder %v570, 11
        %v572 = vsel %vm571, %v570, 11
        %v573 = vadd.s32 %v572, 17
        %v574 = vlaneseq
        %v575 = vshrl.u32 %v574, 7
        %v576 = vsub.s32 0, %v575
        %v577 = vrot.slane %v573, %v576
        %v578 = vlaneseq
        %v579 = vshrl.u32 %v578, 7
        %v580 = vsub.s32 1, %v579
        %v581 = vrot.slane %v573, %v580
        %vm582 = vcmp.eq.s32.totalorder %v427, %v577
        %vm583 = vcmp.eq.s32.totalorder %v427, %v581
        %vm584 = vcmp.eq.s32.totalorder %v428, %v577
        %vm585 = vcmp.eq.s32.totalorder %v428, %v581
        %vm586 = vcmp.eq.s32.totalorder %v429, %v577
        %vm587 = vcmp.eq.s32.totalorder %v429, %v581
        %vm588 = vcmp.eq.s32.totalorder %v430, %v577
        %vm589 = vcmp.eq.s32.totalorder %v430, %v581
        %vm590 = vcmp.eq.s32.totalorder %v431, %v577
        %vm591 = vcmp.eq.s32.totalorder %v431, %v581
        %vm592 = vcmp.eq.s32.totalorder %v432, %v577
        %vm593 = vcmp.eq.s32.totalorder %v432, %v581
        %vm594 = vcmp.eq.s32.totalorder %v433, %v577
        %vm595 = vcmp.eq.s32.totalorder %v433, %v581
        %vm596 = vcmp.eq.s32.totalorder %v434, %v577
        %vm597 = vcmp.eq.s32.totalorder %v434, %v581
        %vm598 = vcmp.eq.s32.totalorder %v435, %v577
        %vm599 = vcmp.eq.s32.totalorder %v435, %v581
        %vm600 = vcmp.eq.s32.totalorder %v436, %v577
        %vm601 = vcmp.eq.s32.totalorder %v436, %v581
        %vm602 = vcmp.eq.s32.totalorder %v437, %v577
        %vm603 = vcmp.eq.s32.totalorder %v437, %v581
        %vm604 = vcmp.eq.s32.totalorder %v438, %v577
        %vm605 = vcmp.eq.s32.totalorder %v438, %v581
        %vm606 = vcmp.eq.s32.totalorder %v439, %v577
        %vm607 = vcmp.eq.s32.totalorder %v439, %v581
        %vm608 = vcmp.eq.s32.totalorder %v440, %v577
        %vm609 = vcmp.eq.s32.totalorder %v440, %v581
        %vm610 = vcmp.eq.s32.totalorder %v441, %v577
        %vm611 = vcmp.eq.s32.totalorder %v441, %v581
        %vm612 = vcmp.eq.s32.totalorder %v442, %v577
        %vm613 = vcmp.eq.s32.totalorder %v442, %v581
        %vm614 = vmor %vm535, %vm582
        %vm615 = vmor %vm536, %vm583
        %vm616 = vmor %vm537, %vm584
        %vm617 = vmor %vm538, %vm585
        %vm618 = vmor %vm539, %vm586
        %vm619 = vmor %vm540, %vm587
        %vm620 = vmor %vm541, %vm588
        %vm621 = vmor %vm542, %vm589
        %vm622 = vmor %vm543, %vm590
        %vm623 = vmor %vm544, %vm591
        %vm624 = vmor %vm545, %vm592
        %vm625 = vmor %vm546, %vm593
        %vm626 = vmor %vm547, %vm594
        %vm627 = vmor %vm548, %vm595
        %vm628 = vmor %vm549, %vm596
        %vm629 = vmor %vm550, %vm597
        %vm630 = vmor %vm551, %vm598
        %vm631 = vmor %vm552, %vm599
        %vm632 = vmor %vm553, %vm600
        %vm633 = vmor %vm554, %vm601
        %vm634 = vmor %vm555, %vm602
        %vm635 = vmor %vm556, %vm603
        %vm636 = vmor %vm557, %vm604
        %vm637 = vmor %vm558, %vm605
        %vm638 = vmor %vm559, %vm606
        %vm639 = vmor %vm560, %vm607
        %vm640 = vmor %vm561, %vm608
        %vm641 = vmor %vm562, %vm609
        %vm642 = vmor %vm563, %vm610
        %vm643 = vmor %vm564, %vm611
        %vm644 = vmor %vm565, %vm612
        %vm645 = vmor %vm566, %vm613
        %s646 = scalar_lea.vmem %s400, 3
        %v647 = vld [vmem:[%s646] ss:$8 sm:$0x3]
        %vm648 = vcmp.gt.s32.totalorder %v647, 0
        %v649 = vsel %vm648, %v647, 0
        %vm650 = vcmp.lt.s32.totalorder %v649, 19
        %v651 = vsel %vm650, %v649, 19
        %v652 = vadd.s32 %v651, 29
        %v653 = vlaneseq
        %v654 = vshrl.u32 %v653, 7
        %v655 = vsub.s32 0, %v654
        %v656 = vrot.slane %v652, %v655
        %v657 = vlaneseq
        %v658 = vshrl.u32 %v657, 7
        %v659 = vsub.s32 1, %v658
        %v660 = vrot.slane %v652, %v659
        %vm661 = vcmp.eq.s32.totalorder %v427, %v656
        %vm662 = vcmp.eq.s32.totalorder %v427, %v660
        %vm663 = vcmp.eq.s32.totalorder %v428, %v656
        %vm664 = vcmp.eq.s32.totalorder %v428, %v660
        %vm665 = vcmp.eq.s32.totalorder %v429, %v656
        %vm666 = vcmp.eq.s32.totalorder %v429, %v660
        %vm667 = vcmp.eq.s32.totalorder %v430, %v656
        %vm668 = vcmp.eq.s32.totalorder %v430, %v660
        %vm669 = vcmp.eq.s32.totalorder %v431, %v656
        %vm670 = vcmp.eq.s32.totalorder %v431, %v660
        %vm671 = vcmp.eq.s32.totalorder %v432, %v656
        %vm672 = vcmp.eq.s32.totalorder %v432, %v660
        %vm673 = vcmp.eq.s32.totalorder %v433, %v656
        %vm674 = vcmp.eq.s32.totalorder %v433, %v660
        %vm675 = vcmp.eq.s32.totalorder %v434, %v656
        %vm676 = vcmp.eq.s32.totalorder %v434, %v660
        %vm677 = vcmp.eq.s32.totalorder %v435, %v656
        %vm678 = vcmp.eq.s32.totalorder %v435, %v660
        %vm679 = vcmp.eq.s32.totalorder %v436, %v656
        %vm680 = vcmp.eq.s32.totalorder %v436, %v660
        %vm681 = vcmp.eq.s32.totalorder %v437, %v656
        %vm682 = vcmp.eq.s32.totalorder %v437, %v660
        %vm683 = vcmp.eq.s32.totalorder %v438, %v656
        %vm684 = vcmp.eq.s32.totalorder %v438, %v660
        %vm685 = vcmp.eq.s32.totalorder %v439, %v656
        %vm686 = vcmp.eq.s32.totalorder %v439, %v660
        %vm687 = vcmp.eq.s32.totalorder %v440, %v656
        %vm688 = vcmp.eq.s32.totalorder %v440, %v660
        %vm689 = vcmp.eq.s32.totalorder %v441, %v656
        %vm690 = vcmp.eq.s32.totalorder %v441, %v660
        %vm691 = vcmp.eq.s32.totalorder %v442, %v656
        %vm692 = vcmp.eq.s32.totalorder %v442, %v660
        %vm693 = vmor %vm614, %vm661
        %vm694 = vmor %vm615, %vm662
        %vm695 = vmor %vm616, %vm663
        %vm696 = vmor %vm617, %vm664
        %vm697 = vmor %vm618, %vm665
        %vm698 = vmor %vm619, %vm666
        %vm699 = vmor %vm620, %vm667
        %vm700 = vmor %vm621, %vm668
        %vm701 = vmor %vm622, %vm669
        %vm702 = vmor %vm623, %vm670
        %vm703 = vmor %vm624, %vm671
        %vm704 = vmor %vm625, %vm672
        %vm705 = vmor %vm626, %vm673
        %vm706 = vmor %vm627, %vm674
        %vm707 = vmor %vm628, %vm675
        %vm708 = vmor %vm629, %vm676
        %vm709 = vmor %vm630, %vm677
        %vm710 = vmor %vm631, %vm678
        %vm711 = vmor %vm632, %vm679
        %vm712 = vmor %vm633, %vm680
        %vm713 = vmor %vm634, %vm681
        %vm714 = vmor %vm635, %vm682
        %vm715 = vmor %vm636, %vm683
        %vm716 = vmor %vm637, %vm684
        %vm717 = vmor %vm638, %vm685
        %vm718 = vmor %vm639, %vm686
        %vm719 = vmor %vm640, %vm687
        %vm720 = vmor %vm641, %vm688
        %vm721 = vmor %vm642, %vm689
        %vm722 = vmor %vm643, %vm690
        %vm723 = vmor %vm644, %vm691
        %vm724 = vmor %vm645, %vm692
        %s725 = scalar_lea.vmem %s400, 4
        %v726 = vld [vmem:[%s725] ss:$8 sm:$0x3]
        %vm727 = vcmp.gt.s32.totalorder %v726, 0
        %v728 = vsel %vm727, %v726, 0
        %vm729 = vcmp.lt.s32.totalorder %v728, 14
        %v730 = vsel %vm729, %v728, 14
        %v731 = vadd.s32 %v730, 49
        %v732 = vlaneseq
        %v733 = vshrl.u32 %v732, 7
        %v734 = vsub.s32 0, %v733
        %v735 = vrot.slane %v731, %v734
        %v736 = vlaneseq
        %v737 = vshrl.u32 %v736, 7
        %v738 = vsub.s32 1, %v737
        %v739 = vrot.slane %v731, %v738
        %vm740 = vcmp.eq.s32.totalorder %v427, %v735
        %vm741 = vcmp.eq.s32.totalorder %v427, %v739
        %vm742 = vcmp.eq.s32.totalorder %v428, %v735
        %vm743 = vcmp.eq.s32.totalorder %v428, %v739
        %vm744 = vcmp.eq.s32.totalorder %v429, %v735
        %vm745 = vcmp.eq.s32.totalorder %v429, %v739
        %vm746 = vcmp.eq.s32.totalorder %v430, %v735
        %vm747 = vcmp.eq.s32.totalorder %v430, %v739
        %vm748 = vcmp.eq.s32.totalorder %v431, %v735
        %vm749 = vcmp.eq.s32.totalorder %v431, %v739
        %vm750 = vcmp.eq.s32.totalorder %v432, %v735
        %vm751 = vcmp.eq.s32.totalorder %v432, %v739
        %vm752 = vcmp.eq.s32.totalorder %v433, %v735
        %vm753 = vcmp.eq.s32.totalorder %v433, %v739
        %vm754 = vcmp.eq.s32.totalorder %v434, %v735
        %vm755 = vcmp.eq.s32.totalorder %v434, %v739
        %vm756 = vcmp.eq.s32.totalorder %v435, %v735
        %vm757 = vcmp.eq.s32.totalorder %v435, %v739
        %vm758 = vcmp.eq.s32.totalorder %v436, %v735
        %vm759 = vcmp.eq.s32.totalorder %v436, %v739
        %vm760 = vcmp.eq.s32.totalorder %v437, %v735
        %vm761 = vcmp.eq.s32.totalorder %v437, %v739
        %vm762 = vcmp.eq.s32.totalorder %v438, %v735
        %vm763 = vcmp.eq.s32.totalorder %v438, %v739
        %vm764 = vcmp.eq.s32.totalorder %v439, %v735
        %vm765 = vcmp.eq.s32.totalorder %v439, %v739
        %vm766 = vcmp.eq.s32.totalorder %v440, %v735
        %vm767 = vcmp.eq.s32.totalorder %v440, %v739
        %vm768 = vcmp.eq.s32.totalorder %v441, %v735
        %vm769 = vcmp.eq.s32.totalorder %v441, %v739
        %vm770 = vcmp.eq.s32.totalorder %v442, %v735
        %vm771 = vcmp.eq.s32.totalorder %v442, %v739
        %vm772 = vmor %vm693, %vm740
        %vm773 = vmor %vm694, %vm741
        %vm774 = vmor %vm695, %vm742
        %vm775 = vmor %vm696, %vm743
        %vm776 = vmor %vm697, %vm744
        %vm777 = vmor %vm698, %vm745
        %vm778 = vmor %vm699, %vm746
        %vm779 = vmor %vm700, %vm747
        %vm780 = vmor %vm701, %vm748
        %vm781 = vmor %vm702, %vm749
        %vm782 = vmor %vm703, %vm750
        %vm783 = vmor %vm704, %vm751
        %vm784 = vmor %vm705, %vm752
        %vm785 = vmor %vm706, %vm753
        %vm786 = vmor %vm707, %vm754
        %vm787 = vmor %vm708, %vm755
        %vm788 = vmor %vm709, %vm756
        %vm789 = vmor %vm710, %vm757
        %vm790 = vmor %vm711, %vm758
        %vm791 = vmor %vm712, %vm759
        %vm792 = vmor %vm713, %vm760
        %vm793 = vmor %vm714, %vm761
        %vm794 = vmor %vm715, %vm762
        %vm795 = vmor %vm716, %vm763
        %vm796 = vmor %vm717, %vm764
        %vm797 = vmor %vm718, %vm765
        %vm798 = vmor %vm719, %vm766
        %vm799 = vmor %vm720, %vm767
        %vm800 = vmor %vm721, %vm768
        %vm801 = vmor %vm722, %vm769
        %vm802 = vmor %vm723, %vm770
        %vm803 = vmor %vm724, %vm771
        %v804 = vsel %vm772, 1, 0
        %v805 = vsel %vm773, 1, 0
        %v806 = vsel %vm774, 1, 0
        %v807 = vsel %vm775, 1, 0
        %v808 = vsel %vm776, 1, 0
        %v809 = vsel %vm777, 1, 0
        %v810 = vsel %vm778, 1, 0
        %v811 = vsel %vm779, 1, 0
        %v812 = vsel %vm780, 1, 0
        %v813 = vsel %vm781, 1, 0
        %v814 = vsel %vm782, 1, 0
        %v815 = vsel %vm783, 1, 0
        %v816 = vsel %vm784, 1, 0
        %v817 = vsel %vm785, 1, 0
        %v818 = vsel %vm786, 1, 0
        %v819 = vsel %vm787, 1, 0
        %v820 = vsel %vm788, 1, 0
        %v821 = vsel %vm789, 1, 0
        %v822 = vsel %vm790, 1, 0
        %v823 = vsel %vm791, 1, 0
        %v824 = vsel %vm792, 1, 0
        %v825 = vsel %vm793, 1, 0
        %v826 = vsel %vm794, 1, 0
        %v827 = vsel %vm795, 1, 0
        %v828 = vsel %vm796, 1, 0
        %v829 = vsel %vm797, 1, 0
        %v830 = vsel %vm798, 1, 0
        %v831 = vsel %vm799, 1, 0
        %v832 = vsel %vm800, 1, 0
        %v833 = vsel %vm801, 1, 0
        %v834 = vsel %vm802, 1, 0
        %v835 = vsel %vm803, 1, 0
        %v836 = vcvt.s32.f32 %v804
        %v837 = vcvt.s32.f32 %v805
        %v838 = vcvt.s32.f32 %v806
        %v839 = vcvt.s32.f32 %v807
        %v840 = vcvt.s32.f32 %v808
        %v841 = vcvt.s32.f32 %v809
        %v842 = vcvt.s32.f32 %v810
        %v843 = vcvt.s32.f32 %v811
        %v844 = vcvt.s32.f32 %v812
        %v845 = vcvt.s32.f32 %v813
        %v846 = vcvt.s32.f32 %v814
        %v847 = vcvt.s32.f32 %v815
        %v848 = vcvt.s32.f32 %v816
        %v849 = vcvt.s32.f32 %v817
        %v850 = vcvt.s32.f32 %v818
        %v851 = vcvt.s32.f32 %v819
        %v852 = vcvt.s32.f32 %v820
        %v853 = vcvt.s32.f32 %v821
        %v854 = vcvt.s32.f32 %v822
        %v855 = vcvt.s32.f32 %v823
        %v856 = vcvt.s32.f32 %v824
        %v857 = vcvt.s32.f32 %v825
        %v858 = vcvt.s32.f32 %v826
        %v859 = vcvt.s32.f32 %v827
        %v860 = vcvt.s32.f32 %v828
        %v861 = vcvt.s32.f32 %v829
        %v862 = vcvt.s32.f32 %v830
        %v863 = vcvt.s32.f32 %v831
        %v864 = vcvt.s32.f32 %v832
        %v865 = vcvt.s32.f32 %v833
        %v866 = vcvt.s32.f32 %v834
        %v867 = vcvt.s32.f32 %v835
        %v868 = vpack.c.bf16 %v838, %v836
        %v869 = vpack.c.bf16 %v839, %v837
        %v870 = vpack.c.bf16 %v842, %v840
        %v871 = vpack.c.bf16 %v843, %v841
        %v872 = vpack.c.bf16 %v846, %v844
        %v873 = vpack.c.bf16 %v847, %v845
        %v874 = vpack.c.bf16 %v850, %v848
        %v875 = vpack.c.bf16 %v851, %v849
        %v876 = vpack.c.bf16 %v854, %v852
        %v877 = vpack.c.bf16 %v855, %v853
        %v878 = vpack.c.bf16 %v858, %v856
        %v879 = vpack.c.bf16 %v859, %v857
        %v880 = vpack.c.bf16 %v862, %v860
        %v881 = vpack.c.bf16 %v863, %v861
        %v882 = vpack.c.bf16 %v866, %v864
        %v883 = vpack.c.bf16 %v867, %v865
        %v884 = vld [vmem:[%s414] sm:$0xf]
        %v885 = vld [vmem:[%s3] sm:$0xff]
        %v886 = vld [vmem:[%s3 + $0x8] sm:$0xff]
        %v887 = vld [vmem:[%s3 + $0x10] sm:$0xff]
        %v888 = vld [vmem:[%s3 + $0x18] sm:$0xff]
        %v889 = vld [vmem:[%s3 + $0x20] sm:$0xff]
        %v890 = vld [vmem:[%s3 + $0x28] sm:$0xff]
        %v891 = vld [vmem:[%s3 + $0x30] sm:$0xff]
        %v892 = vld [vmem:[%s3 + $0x38] sm:$0xff]
        %894 = vset.pattern.permute.xlu0 0
        %895 = vperm.xlu0 %894, %v885
        %v896 = vpop.permute.xlu0 %895
        %899 = vset.pattern.permute.xlu0 0
        %900 = vperm.xlu0 %899, %v886
        %v901 = vpop.permute.xlu0 %900
        %904 = vset.pattern.permute.xlu0 0
        %905 = vperm.xlu0 %904, %v887
        %v906 = vpop.permute.xlu0 %905
        %909 = vset.pattern.permute.xlu0 0
        %910 = vperm.xlu0 %909, %v888
        %v911 = vpop.permute.xlu0 %910
        %914 = vset.pattern.permute.xlu0 0
        %915 = vperm.xlu0 %914, %v889
        %v916 = vpop.permute.xlu0 %915
        %919 = vset.pattern.permute.xlu0 0
        %920 = vperm.xlu0 %919, %v890
        %v921 = vpop.permute.xlu0 %920
        %924 = vset.pattern.permute.xlu0 0
        %925 = vperm.xlu0 %924, %v891
        %v926 = vpop.permute.xlu0 %925
        %929 = vset.pattern.permute.xlu0 0
        %930 = vperm.xlu0 %929, %v892
        %v931 = vpop.permute.xlu0 %930
        %v934 = vlaneseq
        %v935 = vshrl.u32 %v934, 7
        %v936 = vsub.s32 0, %v935
        %v937 = vrot.slane %v884, %v936
        %v938 = vlaneseq
        %v939 = vshrl.u32 %v938, 7
        %v940 = vsub.s32 2, %v939
        %v941 = vrot.slane %v884, %v940
        %v944 = vlaneseq
        %v945 = vshrl.u32 %v944, 7
        %v946 = vsub.s32 0, %v945
        %v947 = vrot.slane %v937, %v946
        %v948 = vlaneseq
        %v949 = vshrl.u32 %v948, 7
        %v950 = vsub.s32 0, %v949
        %v951 = vrot.slane %v941, %v950
        %v952 = vmul.f32 %v896, %v947
        %v953 = vmul.f32 %v896, %v951
        %v954 = vmul.f32 %v901, %v947
        %v955 = vmul.f32 %v901, %v951
        %v956 = vmul.f32 %v906, %v947
        %v957 = vmul.f32 %v906, %v951
        %v958 = vmul.f32 %v911, %v947
        %v959 = vmul.f32 %v911, %v951
        %v960 = vmul.f32 %v916, %v947
        %v961 = vmul.f32 %v916, %v951
        %v962 = vmul.f32 %v921, %v947
        %v963 = vmul.f32 %v921, %v951
        %v964 = vmul.f32 %v926, %v947
        %v965 = vmul.f32 %v926, %v951
        %v966 = vmul.f32 %v931, %v947
        %v967 = vmul.f32 %v931, %v951
        %968 = vset.pattern.permute.xlu0 1
        %969 = vperm.xlu0 %968, %v885
        %v970 = vpop.permute.xlu0 %969
        %972 = vset.pattern.permute.xlu0 1
        %973 = vperm.xlu0 %972, %v886
        %v974 = vpop.permute.xlu0 %973
        %976 = vset.pattern.permute.xlu0 1
        %977 = vperm.xlu0 %976, %v887
        %v978 = vpop.permute.xlu0 %977
        %980 = vset.pattern.permute.xlu0 1
        %981 = vperm.xlu0 %980, %v888
        %v982 = vpop.permute.xlu0 %981
        %984 = vset.pattern.permute.xlu0 1
        %985 = vperm.xlu0 %984, %v889
        %v986 = vpop.permute.xlu0 %985
        %988 = vset.pattern.permute.xlu0 1
        %989 = vperm.xlu0 %988, %v890
        %v990 = vpop.permute.xlu0 %989
        %992 = vset.pattern.permute.xlu0 1
        %993 = vperm.xlu0 %992, %v891
        %v994 = vpop.permute.xlu0 %993
        %996 = vset.pattern.permute.xlu0 1
        %997 = vperm.xlu0 %996, %v892
        %v998 = vpop.permute.xlu0 %997
        %v1000 = vlaneseq
        %v1001 = vshrl.u32 %v1000, 7
        %v1002 = vsub.s32 1, %v1001
        %v1003 = vrot.slane %v884, %v1002
        %v1004 = vlaneseq
        %v1005 = vshrl.u32 %v1004, 7
        %v1006 = vsub.s32 3, %v1005
        %v1007 = vrot.slane %v884, %v1006
        %v1010 = vlaneseq
        %v1011 = vshrl.u32 %v1010, 7
        %v1012 = vsub.s32 1, %v1011
        %v1013 = vrot.slane %v1003, %v1012
        %v1014 = vlaneseq
        %v1015 = vshrl.u32 %v1014, 7
        %v1016 = vsub.s32 1, %v1015
        %v1017 = vrot.slane %v1007, %v1016
        %v1018 = vmul.f32 %v970, %v1013
        %v1019 = vmul.f32 %v970, %v1017
        %v1020 = vmul.f32 %v974, %v1013
        %v1021 = vmul.f32 %v974, %v1017
        %v1022 = vmul.f32 %v978, %v1013
        %v1023 = vmul.f32 %v978, %v1017
        %v1024 = vmul.f32 %v982, %v1013
        %v1025 = vmul.f32 %v982, %v1017
        %v1026 = vmul.f32 %v986, %v1013
        %v1027 = vmul.f32 %v986, %v1017
        %v1028 = vmul.f32 %v990, %v1013
        %v1029 = vmul.f32 %v990, %v1017
        %v1030 = vmul.f32 %v994, %v1013
        %v1031 = vmul.f32 %v994, %v1017
        %v1032 = vmul.f32 %v998, %v1013
        %v1033 = vmul.f32 %v998, %v1017
        %v1034 = vadd.f32 %v952, %v1018
        %v1035 = vadd.f32 %v953, %v1019
        %v1036 = vadd.f32 %v954, %v1020
        %v1037 = vadd.f32 %v955, %v1021
        %v1038 = vadd.f32 %v956, %v1022
        %v1039 = vadd.f32 %v957, %v1023
        %v1040 = vadd.f32 %v958, %v1024
        %v1041 = vadd.f32 %v959, %v1025
        %v1042 = vadd.f32 %v960, %v1026
        %v1043 = vadd.f32 %v961, %v1027
        %v1044 = vadd.f32 %v962, %v1028
        %v1045 = vadd.f32 %v963, %v1029
        %v1046 = vadd.f32 %v964, %v1030
        %v1047 = vadd.f32 %v965, %v1031
        %v1048 = vadd.f32 %v966, %v1032
        %v1049 = vadd.f32 %v967, %v1033
        %v1050 = vld [vmem:[%s4] sm:$0xff]
        %v1051 = vld [vmem:[%s4 + $0x8] sm:$0xff]
        %v1052 = vld [vmem:[%s4 + $0x10] sm:$0xff]
        %v1053 = vld [vmem:[%s4 + $0x18] sm:$0xff]
        %v1054 = vld [vmem:[%s4 + $0x20] sm:$0xff]
        %v1055 = vld [vmem:[%s4 + $0x28] sm:$0xff]
        %v1056 = vld [vmem:[%s4 + $0x30] sm:$0xff]
        %v1057 = vld [vmem:[%s4 + $0x38] sm:$0xff]
        %1059 = vset.pattern.permute.xlu0 0
        %1060 = vperm.xlu0 %1059, %v1050
        %v1061 = vpop.permute.xlu0 %1060
        %1064 = vset.pattern.permute.xlu0 0
        %1065 = vperm.xlu0 %1064, %v1051
        %v1066 = vpop.permute.xlu0 %1065
        %1069 = vset.pattern.permute.xlu0 0
        %1070 = vperm.xlu0 %1069, %v1052
        %v1071 = vpop.permute.xlu0 %1070
        %1074 = vset.pattern.permute.xlu0 0
        %1075 = vperm.xlu0 %1074, %v1053
        %v1076 = vpop.permute.xlu0 %1075
        %1079 = vset.pattern.permute.xlu0 0
        %1080 = vperm.xlu0 %1079, %v1054
        %v1081 = vpop.permute.xlu0 %1080
        %1084 = vset.pattern.permute.xlu0 0
        %1085 = vperm.xlu0 %1084, %v1055
        %v1086 = vpop.permute.xlu0 %1085
        %1089 = vset.pattern.permute.xlu0 0
        %1090 = vperm.xlu0 %1089, %v1056
        %v1091 = vpop.permute.xlu0 %1090
        %1094 = vset.pattern.permute.xlu0 0
        %1095 = vperm.xlu0 %1094, %v1057
        %v1096 = vpop.permute.xlu0 %1095
        %v1098 = vadd.f32 %v1034, %v1061
        %v1099 = vadd.f32 %v1035, %v1061
        %v1100 = vadd.f32 %v1036, %v1066
        %v1101 = vadd.f32 %v1037, %v1066
        %v1102 = vadd.f32 %v1038, %v1071
        %v1103 = vadd.f32 %v1039, %v1071
        %v1104 = vadd.f32 %v1040, %v1076
        %v1105 = vadd.f32 %v1041, %v1076
        %v1106 = vadd.f32 %v1042, %v1081
        %v1107 = vadd.f32 %v1043, %v1081
        %v1108 = vadd.f32 %v1044, %v1086
        %v1109 = vadd.f32 %v1045, %v1086
        %v1110 = vadd.f32 %v1046, %v1091
        %v1111 = vadd.f32 %v1047, %v1091
        %v1112 = vadd.f32 %v1048, %v1096
        %v1113 = vadd.f32 %v1049, %v1096
        %v1114 = vmax.f32 %v1098, 0.0
        %v1115 = vmax.f32 %v1099, 0.0
        %v1116 = vmax.f32 %v1100, 0.0
        %v1117 = vmax.f32 %v1101, 0.0
        %v1118 = vmax.f32 %v1102, 0.0
        %v1119 = vmax.f32 %v1103, 0.0
        %v1120 = vmax.f32 %v1104, 0.0
        %v1121 = vmax.f32 %v1105, 0.0
        %v1122 = vmax.f32 %v1106, 0.0
        %v1123 = vmax.f32 %v1107, 0.0
        %v1124 = vmax.f32 %v1108, 0.0
        %v1125 = vmax.f32 %v1109, 0.0
        %v1126 = vmax.f32 %v1110, 0.0
        %v1127 = vmax.f32 %v1111, 0.0
        %v1128 = vmax.f32 %v1112, 0.0
        %v1129 = vmax.f32 %v1113, 0.0
        %v1130 = vpack.c.bf16 %v1116, %v1114
        %v1131 = vpack.c.bf16 %v1117, %v1115
        %v1132 = vpack.c.bf16 %v1120, %v1118
        %v1133 = vpack.c.bf16 %v1121, %v1119
        %v1134 = vpack.c.bf16 %v1124, %v1122
        %v1135 = vpack.c.bf16 %v1125, %v1123
        %v1136 = vpack.c.bf16 %v1128, %v1126
        %v1137 = vpack.c.bf16 %v1129, %v1127
        %v1138 = vld [vmem:[%s2] sm:$0xff]
        %v1139 = vld [vmem:[%s2 + $0x8] sm:$0xff]
        %v1140 = vld [vmem:[%s2 + $0x10] sm:$0xff]
        %v1141 = vld [vmem:[%s2 + $0x18] sm:$0xff]
        %v1142 = vld [vmem:[%s2 + $0x20] sm:$0xff]
        %v1143 = vld [vmem:[%s2 + $0x28] sm:$0xff]
        %v1144 = vld [vmem:[%s2 + $0x30] sm:$0xff]
        %v1145 = vld [vmem:[%s2 + $0x38] sm:$0xff]
        %v1146 = vld [vmem:[%s2 + $0x40] sm:$0xff]
        %v1147 = vld [vmem:[%s2 + $0x48] sm:$0xff]
        %v1148 = vld [vmem:[%s2 + $0x50] sm:$0xff]
        %v1149 = vld [vmem:[%s2 + $0x58] sm:$0xff]
        %v1150 = vld [vmem:[%s2 + $0x60] sm:$0xff]
        %v1151 = vld [vmem:[%s2 + $0x68] sm:$0xff]
        %v1152 = vld [vmem:[%s2 + $0x70] sm:$0xff]
        %v1153 = vld [vmem:[%s2 + $0x78] sm:$0xff]
        %v1154 = vld [vmem:[%s5] sm:$0xff]
        %v1155 = vld [vmem:[%s5 + $0x8] sm:$0xff]
        %v1156 = vld [vmem:[%s5 + $0x10] sm:$0xff]
        %v1157 = vld [vmem:[%s5 + $0x18] sm:$0xff]
        %v1158 = vld [vmem:[%s5 + $0x20] sm:$0xff]
        %v1159 = vld [vmem:[%s5 + $0x28] sm:$0xff]
        %v1160 = vld [vmem:[%s5 + $0x30] sm:$0xff]
        %v1161 = vld [vmem:[%s5 + $0x38] sm:$0xff]
        %v1162 = vld [vmem:[%s5 + $0x40] sm:$0xff]
        %v1163 = vld [vmem:[%s5 + $0x48] sm:$0xff]
        %v1164 = vld [vmem:[%s5 + $0x50] sm:$0xff]
        %v1165 = vld [vmem:[%s5 + $0x58] sm:$0xff]
        %v1166 = vld [vmem:[%s5 + $0x60] sm:$0xff]
        %v1167 = vld [vmem:[%s5 + $0x68] sm:$0xff]
        %v1168 = vld [vmem:[%s5 + $0x70] sm:$0xff]
        %v1169 = vld [vmem:[%s5 + $0x78] sm:$0xff]
        %1171 = vset.pattern.permute.xlu0 0
        %1172 = vperm.xlu0 %1171, %v1154
        %v1173 = vpop.permute.xlu0 %1172
        %1176 = vset.pattern.permute.xlu0 0
        %1177 = vperm.xlu0 %1176, %v1155
        %v1178 = vpop.permute.xlu0 %1177
        %1181 = vset.pattern.permute.xlu0 0
        %1182 = vperm.xlu0 %1181, %v1156
        %v1183 = vpop.permute.xlu0 %1182
        %1186 = vset.pattern.permute.xlu0 0
        %1187 = vperm.xlu0 %1186, %v1157
        %v1188 = vpop.permute.xlu0 %1187
        %1191 = vset.pattern.permute.xlu0 0
        %1192 = vperm.xlu0 %1191, %v1158
        %v1193 = vpop.permute.xlu0 %1192
        %1196 = vset.pattern.permute.xlu0 0
        %1197 = vperm.xlu0 %1196, %v1159
        %v1198 = vpop.permute.xlu0 %1197
        %1201 = vset.pattern.permute.xlu0 0
        %1202 = vperm.xlu0 %1201, %v1160
        %v1203 = vpop.permute.xlu0 %1202
        %1206 = vset.pattern.permute.xlu0 0
        %1207 = vperm.xlu0 %1206, %v1161
        %v1208 = vpop.permute.xlu0 %1207
        %1211 = vset.pattern.permute.xlu0 0
        %1212 = vperm.xlu0 %1211, %v1162
        %v1213 = vpop.permute.xlu0 %1212
        %1216 = vset.pattern.permute.xlu0 0
        %1217 = vperm.xlu0 %1216, %v1163
        %v1218 = vpop.permute.xlu0 %1217
        %1221 = vset.pattern.permute.xlu0 0
        %1222 = vperm.xlu0 %1221, %v1164
        %v1223 = vpop.permute.xlu0 %1222
        %1226 = vset.pattern.permute.xlu0 0
        %1227 = vperm.xlu0 %1226, %v1165
        %v1228 = vpop.permute.xlu0 %1227
        %1231 = vset.pattern.permute.xlu0 0
        %1232 = vperm.xlu0 %1231, %v1166
        %v1233 = vpop.permute.xlu0 %1232
        %1236 = vset.pattern.permute.xlu0 0
        %1237 = vperm.xlu0 %1236, %v1167
        %v1238 = vpop.permute.xlu0 %1237
        %1241 = vset.pattern.permute.xlu0 0
        %1242 = vperm.xlu0 %1241, %v1168
        %v1243 = vpop.permute.xlu0 %1242
        %1246 = vset.pattern.permute.xlu0 0
        %1247 = vperm.xlu0 %1246, %v1169
        %v1248 = vpop.permute.xlu0 %1247
        %v1266 = vunpack.c.l.b16 %v1138
        %v1267 = vunpack.c.h.b16 %v1138
        %v1268 = vunpack.c.l.b16 %v1139
        %v1269 = vunpack.c.h.b16 %v1139
        %v1270 = vunpack.c.l.b16 %v1140
        %v1271 = vunpack.c.h.b16 %v1140
        %v1272 = vunpack.c.l.b16 %v1141
        %v1273 = vunpack.c.h.b16 %v1141
        %v1274 = vunpack.c.l.b16 %v1142
        %v1275 = vunpack.c.h.b16 %v1142
        %v1276 = vunpack.c.l.b16 %v1143
        %v1277 = vunpack.c.h.b16 %v1143
        %v1278 = vunpack.c.l.b16 %v1144
        %v1279 = vunpack.c.h.b16 %v1144
        %v1280 = vunpack.c.l.b16 %v1145
        %v1281 = vunpack.c.h.b16 %v1145
        %v1282 = vunpack.c.l.b16 %v1146
        %v1283 = vunpack.c.h.b16 %v1146
        %v1284 = vunpack.c.l.b16 %v1147
        %v1285 = vunpack.c.h.b16 %v1147
        %v1286 = vunpack.c.l.b16 %v1148
        %v1287 = vunpack.c.h.b16 %v1148
        %v1288 = vunpack.c.l.b16 %v1149
        %v1289 = vunpack.c.h.b16 %v1149
        %v1290 = vunpack.c.l.b16 %v1150
        %v1291 = vunpack.c.h.b16 %v1150
        %v1292 = vunpack.c.l.b16 %v1151
        %v1293 = vunpack.c.h.b16 %v1151
        %v1294 = vunpack.c.l.b16 %v1152
        %v1295 = vunpack.c.h.b16 %v1152
        %v1296 = vunpack.c.l.b16 %v1153
        %v1297 = vunpack.c.h.b16 %v1153
        %v1298 = vpack.c.b16 %v1268, %v1266
        %v1299 = vpack.c.b16 %v1269, %v1267
        %v1300 = vpack.c.b16 %v1272, %v1270
        %v1301 = vpack.c.b16 %v1273, %v1271
        %v1302 = vpack.c.b16 %v1276, %v1274
        %v1303 = vpack.c.b16 %v1277, %v1275
        %v1304 = vpack.c.b16 %v1280, %v1278
        %v1305 = vpack.c.b16 %v1281, %v1279
        %v1306 = vpack.c.b16 %v1284, %v1282
        %v1307 = vpack.c.b16 %v1285, %v1283
        %v1308 = vpack.c.b16 %v1288, %v1286
        %v1309 = vpack.c.b16 %v1289, %v1287
        %v1310 = vpack.c.b16 %v1292, %v1290
        %v1311 = vpack.c.b16 %v1293, %v1291
        %v1312 = vpack.c.b16 %v1296, %v1294
        %v1313 = vpack.c.b16 %v1297, %v1295
        %vm1322 = vcmask 523264
        %v1324 = vsel %vm1322, %v1299, 0
        %v1327 = vsel %vm1322, %v1301, 0
        %v1330 = vsel %vm1322, %v1303, 0
        %v1333 = vsel %vm1322, %v1305, 0
        %v1336 = vsel %vm1322, %v1307, 0
        %v1339 = vsel %vm1322, %v1309, 0
        %v1342 = vsel %vm1322, %v1311, 0
        %v1345 = vsel %vm1322, %v1313, 0
        %1347 = vmatprep.subr.bf16.mxu0 %v869
        %1348 = vmatpush1.bf16.msra.mxu0 %v868
        %1349 = vmatprep.subr.bf16.mxu0 %v871
        %1350 = vmatpush1.bf16.msra.mxu0 %v870
        %1351 = vmatprep.subr.bf16.mxu0 %v873
        %1352 = vmatpush1.bf16.msra.mxu0 %v872
        %1353 = vmatprep.subr.bf16.mxu0 %v875
        %1354 = vmatpush1.bf16.msra.mxu0 %v874
        %1355 = vmatprep.subr.bf16.mxu0 %v877
        %1356 = vmatpush1.bf16.msra.mxu0 %v876
        %1357 = vmatprep.subr.bf16.mxu0 %v879
        %1358 = vmatpush1.bf16.msra.mxu0 %v878
        %1359 = vmatprep.subr.bf16.mxu0 %v881
        %1360 = vmatpush1.bf16.msra.mxu0 %v880
        %1361 = vmatprep.subr.bf16.mxu0 %v883
        %1362 = vmatpush1.bf16.msra.mxu0 %v882
        %1363 = vmatprep.subr.bf16.mxu0 %v1131
        %1364 = vmatpush1.bf16.msra.mxu0 %v1130
        %1365 = vmatprep.subr.bf16.mxu0 %v1133
        %1366 = vmatpush1.bf16.msra.mxu0 %v1132
        %1367 = vmatprep.subr.bf16.mxu0 %v1135
        %1368 = vmatpush1.bf16.msra.mxu0 %v1134
        %1369 = vmatprep.subr.bf16.mxu0 %v1137
        %1370 = vmatpush1.bf16.msra.mxu0 %v1136
        %1371 = vmatprep.subr.bf16.mxu0 0
        %1372 = vmatpush1.bf16.msra.mxu0 0
        %1373 = vmatprep.subr.bf16.mxu0 0
        %1374 = vmatpush1.bf16.msra.mxu0 0
        %1375 = vmatprep.subr.bf16.mxu0 0
        %1376 = vmatpush1.bf16.msra.mxu0 0
        %1377 = vmatprep.subr.bf16.mxu0 0
        %1378 = vmatpush1.bf16.msra.mxu0 0
        %1379 = vmatprep.mubr.bf16.mxu0 %v1324
        %1380 = vmatmul.mubr.bf16.gmra.mrb[0].mxu0 %v1298
        %v1381 = vpop.f32.mrb[0].mxu0
        %v1382 = vadd.f32 %v1173, %v1381
        %v1383 = vpop.f32.mrb[0].mxu0
        %v1384 = vadd.f32 %v1173, %v1383
        %v1385 = vpop.f32.mrb[0].mxu0
        %v1386 = vadd.f32 %v1178, %v1385
        %v1387 = vpop.f32.mrb[0].mxu0
        %v1388 = vadd.f32 %v1178, %v1387
        %1389 = vmatprep.mubr.bf16.mxu0 %v1327
        %1390 = vmatmul.mubr.bf16.gmra.mrb[0].mxu0 %v1300
        %v1391 = vpop.f32.mrb[0].mxu0
        %v1392 = vadd.f32 %v1183, %v1391
        %v1393 = vpop.f32.mrb[0].mxu0
        %v1394 = vadd.f32 %v1183, %v1393
        %v1395 = vpop.f32.mrb[0].mxu0
        %v1396 = vadd.f32 %v1188, %v1395
        %v1397 = vpop.f32.mrb[0].mxu0
        %v1398 = vadd.f32 %v1188, %v1397
        %1399 = vmatprep.mubr.bf16.mxu0 %v1330
        %1400 = vmatmul.mubr.bf16.gmra.mrb[0].mxu0 %v1302
        %v1401 = vpop.f32.mrb[0].mxu0
        %v1402 = vadd.f32 %v1193, %v1401
        %v1403 = vpop.f32.mrb[0].mxu0
        %v1404 = vadd.f32 %v1193, %v1403
        %v1405 = vpop.f32.mrb[0].mxu0
        %v1406 = vadd.f32 %v1198, %v1405
        %v1407 = vpop.f32.mrb[0].mxu0
        %v1408 = vadd.f32 %v1198, %v1407
        %1409 = vmatprep.mubr.bf16.mxu0 %v1333
        %1410 = vmatmul.mubr.bf16.gmra.mrb[0].mxu0 %v1304
        %v1411 = vpop.f32.mrb[0].mxu0
        %v1412 = vadd.f32 %v1203, %v1411
        %v1413 = vpop.f32.mrb[0].mxu0
        %v1414 = vadd.f32 %v1203, %v1413
        %v1415 = vpop.f32.mrb[0].mxu0
        %v1416 = vadd.f32 %v1208, %v1415
        %v1417 = vpop.f32.mrb[0].mxu0
        %v1418 = vadd.f32 %v1208, %v1417
        %1419 = vmatprep.mubr.bf16.mxu0 %v1336
        %1420 = vmatmul.mubr.bf16.gmra.mrb[0].mxu0 %v1306
        %v1421 = vpop.f32.mrb[0].mxu0
        %v1422 = vadd.f32 %v1213, %v1421
        %v1423 = vpop.f32.mrb[0].mxu0
        %v1424 = vadd.f32 %v1213, %v1423
        %v1425 = vpop.f32.mrb[0].mxu0
        %v1426 = vadd.f32 %v1218, %v1425
        %v1427 = vpop.f32.mrb[0].mxu0
        %v1428 = vadd.f32 %v1218, %v1427
        %1429 = vmatprep.mubr.bf16.mxu0 %v1339
        %1430 = vmatmul.mubr.bf16.gmra.mrb[0].mxu0 %v1308
        %v1431 = vpop.f32.mrb[0].mxu0
        %v1432 = vadd.f32 %v1223, %v1431
        %v1433 = vpop.f32.mrb[0].mxu0
        %v1434 = vadd.f32 %v1223, %v1433
        %v1435 = vpop.f32.mrb[0].mxu0
        %v1436 = vadd.f32 %v1228, %v1435
        %v1437 = vpop.f32.mrb[0].mxu0
        %v1438 = vadd.f32 %v1228, %v1437
        %1439 = vmatprep.mubr.bf16.mxu0 %v1342
        %1440 = vmatmul.mubr.bf16.gmra.mrb[0].mxu0 %v1310
        %v1441 = vpop.f32.mrb[0].mxu0
        %v1442 = vadd.f32 %v1233, %v1441
        %v1443 = vpop.f32.mrb[0].mxu0
        %v1444 = vadd.f32 %v1233, %v1443
        %v1445 = vpop.f32.mrb[0].mxu0
        %v1446 = vadd.f32 %v1238, %v1445
        %v1447 = vpop.f32.mrb[0].mxu0
        %v1448 = vadd.f32 %v1238, %v1447
        %1449 = vmatprep.mubr.bf16.mxu0 %v1345
        %1450 = vmatmul.mubr.bf16.gmra.mrb[0].mxu0 %v1312
        %v1451 = vpop.f32.mrb[0].mxu0
        %v1452 = vadd.f32 %v1243, %v1451
        %v1453 = vpop.f32.mrb[0].mxu0
        %v1454 = vadd.f32 %v1243, %v1453
        %v1455 = vpop.f32.mrb[0].mxu0
        %v1456 = vadd.f32 %v1248, %v1455
        %v1457 = vpop.f32.mrb[0].mxu0
        %v1458 = vadd.f32 %v1248, %v1457
        %1459 = vdwg.mxu0
        %v1460 = vmax.f32 %v1382, 0.0
        %v1461 = vmax.f32 %v1384, 0.0
        %v1462 = vmax.f32 %v1386, 0.0
        %v1463 = vmax.f32 %v1388, 0.0
        %v1464 = vmax.f32 %v1392, 0.0
        %v1465 = vmax.f32 %v1394, 0.0
        %v1466 = vmax.f32 %v1396, 0.0
        %v1467 = vmax.f32 %v1398, 0.0
        %v1468 = vmax.f32 %v1402, 0.0
        %v1469 = vmax.f32 %v1404, 0.0
        %v1470 = vmax.f32 %v1406, 0.0
        %v1471 = vmax.f32 %v1408, 0.0
        %v1472 = vmax.f32 %v1412, 0.0
        %v1473 = vmax.f32 %v1414, 0.0
        %v1474 = vmax.f32 %v1416, 0.0
        %v1475 = vmax.f32 %v1418, 0.0
        %v1476 = vmax.f32 %v1422, 0.0
        %v1477 = vmax.f32 %v1424, 0.0
        %v1478 = vmax.f32 %v1426, 0.0
        %v1479 = vmax.f32 %v1428, 0.0
        %v1480 = vmax.f32 %v1432, 0.0
        %v1481 = vmax.f32 %v1434, 0.0
        %v1482 = vmax.f32 %v1436, 0.0
        %v1483 = vmax.f32 %v1438, 0.0
        %v1484 = vmax.f32 %v1442, 0.0
        %v1485 = vmax.f32 %v1444, 0.0
        %v1486 = vmax.f32 %v1446, 0.0
        %v1487 = vmax.f32 %v1448, 0.0
        %v1488 = vmax.f32 %v1452, 0.0
        %v1489 = vmax.f32 %v1454, 0.0
        %v1490 = vmax.f32 %v1456, 0.0
        %v1491 = vmax.f32 %v1458, 0.0
        %v1492 = vld [vmem:[%s6] sm:$0xf]
        %v1493 = vld [vmem:[%s6 + $0x4] sm:$0xf]
        %v1494 = vld [vmem:[%s6 + $0x8] sm:$0xf]
        %v1495 = vld [vmem:[%s6 + $0xc] sm:$0xf]
        %v1496 = vld [vmem:[%s6 + $0x10] sm:$0xf]
        %v1497 = vld [vmem:[%s6 + $0x14] sm:$0xf]
        %v1498 = vld [vmem:[%s6 + $0x18] sm:$0xf]
        %v1499 = vld [vmem:[%s6 + $0x1c] sm:$0xf]
        %v1500 = vld [vmem:[%s6 + $0x20] sm:$0xf]
        %v1501 = vld [vmem:[%s6 + $0x24] sm:$0xf]
        %v1502 = vld [vmem:[%s6 + $0x28] sm:$0xf]
        %v1503 = vld [vmem:[%s6 + $0x2c] sm:$0xf]
        %v1504 = vld [vmem:[%s6 + $0x30] sm:$0xf]
        %v1505 = vld [vmem:[%s6 + $0x34] sm:$0xf]
        %v1506 = vld [vmem:[%s6 + $0x38] sm:$0xf]
        %v1507 = vld [vmem:[%s6 + $0x3c] sm:$0xf]
        %v1508 = vpack.c.bf16 %v1462, %v1460
        %v1509 = vpack.c.bf16 %v1463, %v1461
        %v1510 = vpack.c.bf16 %v1466, %v1464
        %v1511 = vpack.c.bf16 %v1467, %v1465
        %v1512 = vpack.c.bf16 %v1470, %v1468
        %v1513 = vpack.c.bf16 %v1471, %v1469
        %v1514 = vpack.c.bf16 %v1474, %v1472
        %v1515 = vpack.c.bf16 %v1475, %v1473
        %v1516 = vpack.c.bf16 %v1478, %v1476
        %v1517 = vpack.c.bf16 %v1479, %v1477
        %v1518 = vpack.c.bf16 %v1482, %v1480
        %v1519 = vpack.c.bf16 %v1483, %v1481
        %v1520 = vpack.c.bf16 %v1486, %v1484
        %v1521 = vpack.c.bf16 %v1487, %v1485
        %v1522 = vpack.c.bf16 %v1490, %v1488
        %v1523 = vpack.c.bf16 %v1491, %v1489
        %v1524 = vld [vmem:[%s7] sm:$0xff]
        %v1525 = vld [vmem:[%s7 + $0x8] sm:$0xff]
        %v1526 = vld [vmem:[%s7 + $0x10] sm:$0xff]
        %v1527 = vld [vmem:[%s7 + $0x18] sm:$0xff]
        %v1528 = vld [vmem:[%s7 + $0x20] sm:$0xff]
        %v1529 = vld [vmem:[%s7 + $0x28] sm:$0xff]
        %v1530 = vld [vmem:[%s7 + $0x30] sm:$0xff]
        %v1531 = vld [vmem:[%s7 + $0x38] sm:$0xff]
        %v1532 = vld [vmem:[%s7 + $0x40] sm:$0xff]
        %v1533 = vld [vmem:[%s7 + $0x48] sm:$0xff]
        %v1534 = vld [vmem:[%s7 + $0x50] sm:$0xff]
        %v1535 = vld [vmem:[%s7 + $0x58] sm:$0xff]
        %v1536 = vld [vmem:[%s7 + $0x60] sm:$0xff]
        %v1537 = vld [vmem:[%s7 + $0x68] sm:$0xff]
        %v1538 = vld [vmem:[%s7 + $0x70] sm:$0xff]
        %v1539 = vld [vmem:[%s7 + $0x78] sm:$0xff]
        %1541 = vset.pattern.permute.xlu0 0
        %1542 = vperm.xlu0 %1541, %v1524
        %v1543 = vpop.permute.xlu0 %1542
        %1546 = vset.pattern.permute.xlu0 0
        %1547 = vperm.xlu0 %1546, %v1525
        %v1548 = vpop.permute.xlu0 %1547
        %1551 = vset.pattern.permute.xlu0 0
        %1552 = vperm.xlu0 %1551, %v1526
        %v1553 = vpop.permute.xlu0 %1552
        %1556 = vset.pattern.permute.xlu0 0
        %1557 = vperm.xlu0 %1556, %v1527
        %v1558 = vpop.permute.xlu0 %1557
        %1561 = vset.pattern.permute.xlu0 0
        %1562 = vperm.xlu0 %1561, %v1528
        %v1563 = vpop.permute.xlu0 %1562
        %1566 = vset.pattern.permute.xlu0 0
        %1567 = vperm.xlu0 %1566, %v1529
        %v1568 = vpop.permute.xlu0 %1567
        %1571 = vset.pattern.permute.xlu0 0
        %1572 = vperm.xlu0 %1571, %v1530
        %v1573 = vpop.permute.xlu0 %1572
        %1576 = vset.pattern.permute.xlu0 0
        %1577 = vperm.xlu0 %1576, %v1531
        %v1578 = vpop.permute.xlu0 %1577
        %1581 = vset.pattern.permute.xlu0 0
        %1582 = vperm.xlu0 %1581, %v1532
        %v1583 = vpop.permute.xlu0 %1582
        %1586 = vset.pattern.permute.xlu0 0
        %1587 = vperm.xlu0 %1586, %v1533
        %v1588 = vpop.permute.xlu0 %1587
        %1591 = vset.pattern.permute.xlu0 0
        %1592 = vperm.xlu0 %1591, %v1534
        %v1593 = vpop.permute.xlu0 %1592
        %1596 = vset.pattern.permute.xlu0 0
        %1597 = vperm.xlu0 %1596, %v1535
        %v1598 = vpop.permute.xlu0 %1597
        %1601 = vset.pattern.permute.xlu0 0
        %1602 = vperm.xlu0 %1601, %v1536
        %v1603 = vpop.permute.xlu0 %1602
        %1606 = vset.pattern.permute.xlu0 0
        %1607 = vperm.xlu0 %1606, %v1537
        %v1608 = vpop.permute.xlu0 %1607
        %1611 = vset.pattern.permute.xlu0 0
        %1612 = vperm.xlu0 %1611, %v1538
        %v1613 = vpop.permute.xlu0 %1612
        %1616 = vset.pattern.permute.xlu0 0
        %1617 = vperm.xlu0 %1616, %v1539
        %v1618 = vpop.permute.xlu0 %1617
        %v1636 = vunpack.c.l.b16 %v1492
        %v1637 = vunpack.c.l.b16 %v1493
        %v1638 = vunpack.c.l.b16 %v1494
        %v1639 = vunpack.c.l.b16 %v1495
        %v1640 = vunpack.c.l.b16 %v1496
        %v1641 = vunpack.c.l.b16 %v1497
        %v1642 = vunpack.c.l.b16 %v1498
        %v1643 = vunpack.c.l.b16 %v1499
        %v1644 = vunpack.c.l.b16 %v1500
        %v1645 = vunpack.c.l.b16 %v1501
        %v1646 = vunpack.c.l.b16 %v1502
        %v1647 = vunpack.c.l.b16 %v1503
        %v1648 = vunpack.c.l.b16 %v1504
        %v1649 = vunpack.c.l.b16 %v1505
        %v1650 = vunpack.c.l.b16 %v1506
        %v1651 = vunpack.c.l.b16 %v1507
        %v1652 = vpack.c.b16 %v1637, %v1636
        %v1653 = vpack.c.b16 %v1639, %v1638
        %v1654 = vpack.c.b16 %v1641, %v1640
        %v1655 = vpack.c.b16 %v1643, %v1642
        %v1656 = vpack.c.b16 %v1645, %v1644
        %v1657 = vpack.c.b16 %v1647, %v1646
        %v1658 = vpack.c.b16 %v1649, %v1648
        %v1659 = vpack.c.b16 %v1651, %v1650
        %1668 = vmatprep.subr.bf16.mxu0 %v1509
        %1669 = vmatpush1.bf16.msra.mxu0 %v1508
        %1670 = vmatprep.subr.bf16.mxu0 %v1511
        %1671 = vmatpush1.bf16.msra.mxu0 %v1510
        %1672 = vmatprep.subr.bf16.mxu0 %v1513
        %1673 = vmatpush1.bf16.msra.mxu0 %v1512
        %1674 = vmatprep.subr.bf16.mxu0 %v1515
        %1675 = vmatpush1.bf16.msra.mxu0 %v1514
        %1676 = vmatprep.subr.bf16.mxu0 %v1517
        %1677 = vmatpush1.bf16.msra.mxu0 %v1516
        %1678 = vmatprep.subr.bf16.mxu0 %v1519
        %1679 = vmatpush1.bf16.msra.mxu0 %v1518
        %1680 = vmatprep.subr.bf16.mxu0 %v1521
        %1681 = vmatpush1.bf16.msra.mxu0 %v1520
        %1682 = vmatprep.subr.bf16.mxu0 %v1523
        %1683 = vmatpush1.bf16.msra.mxu0 %v1522
        %1684 = vmatprep.subr.bf16.mxu0 0
        %1685 = vmatpush1.bf16.msra.mxu0 0
        %1686 = vmatprep.subr.bf16.mxu0 0
        %1687 = vmatpush1.bf16.msra.mxu0 0
        %1688 = vmatprep.subr.bf16.mxu0 0
        %1689 = vmatpush1.bf16.msra.mxu0 0
        %1690 = vmatprep.subr.bf16.mxu0 0
        %1691 = vmatpush1.bf16.msra.mxu0 0
        %1692 = vmatprep.subr.bf16.mxu0 0
        %1693 = vmatpush1.bf16.msra.mxu0 0
        %1694 = vmatprep.subr.bf16.mxu0 0
        %1695 = vmatpush1.bf16.msra.mxu0 0
        %1696 = vmatprep.subr.bf16.mxu0 0
        %1697 = vmatpush1.bf16.msra.mxu0 0
        %1698 = vmatprep.subr.bf16.mxu0 0
        %1699 = vmatpush1.bf16.msra.mxu0 0
        %1700 = vmatprep.mubr.bf16.mxu0 0
        %1701 = vmatmul.mubr.bf16.gmra.mrb[0].mxu0 %v1652
        %v1702 = vpop.f32.mrb[0].mxu0
        %v1703 = vadd.f32 %v1543, %v1702
        %v1704 = vpop.f32.mrb[0].mxu0
        %v1705 = vadd.f32 %v1543, %v1704
        %v1706 = vpop.f32.mrb[0].mxu0
        %v1707 = vadd.f32 %v1548, %v1706
        %v1708 = vpop.f32.mrb[0].mxu0
        %v1709 = vadd.f32 %v1548, %v1708
        %1710 = vmatprep.mubr.bf16.mxu0 0
        %1711 = vmatmul.mubr.bf16.gmra.mrb[0].mxu0 %v1653
        %v1712 = vpop.f32.mrb[0].mxu0
        %v1713 = vadd.f32 %v1553, %v1712
        %v1714 = vpop.f32.mrb[0].mxu0
        %v1715 = vadd.f32 %v1553, %v1714
        %v1716 = vpop.f32.mrb[0].mxu0
        %v1717 = vadd.f32 %v1558, %v1716
        %v1718 = vpop.f32.mrb[0].mxu0
        %v1719 = vadd.f32 %v1558, %v1718
        %1720 = vmatprep.mubr.bf16.mxu0 0
        %1721 = vmatmul.mubr.bf16.gmra.mrb[0].mxu0 %v1654
        %v1722 = vpop.f32.mrb[0].mxu0
        %v1723 = vadd.f32 %v1563, %v1722
        %v1724 = vpop.f32.mrb[0].mxu0
        %v1725 = vadd.f32 %v1563, %v1724
        %v1726 = vpop.f32.mrb[0].mxu0
        %v1727 = vadd.f32 %v1568, %v1726
        %v1728 = vpop.f32.mrb[0].mxu0
        %v1729 = vadd.f32 %v1568, %v1728
        %1730 = vmatprep.mubr.bf16.mxu0 0
        %1731 = vmatmul.mubr.bf16.gmra.mrb[0].mxu0 %v1655
        %v1732 = vpop.f32.mrb[0].mxu0
        %v1733 = vadd.f32 %v1573, %v1732
        %v1734 = vpop.f32.mrb[0].mxu0
        %v1735 = vadd.f32 %v1573, %v1734
        %v1736 = vpop.f32.mrb[0].mxu0
        %v1737 = vadd.f32 %v1578, %v1736
        %v1738 = vpop.f32.mrb[0].mxu0
        %v1739 = vadd.f32 %v1578, %v1738
        %1740 = vmatprep.mubr.bf16.mxu0 0
        %1741 = vmatmul.mubr.bf16.gmra.mrb[0].mxu0 %v1656
        %v1742 = vpop.f32.mrb[0].mxu0
        %v1743 = vadd.f32 %v1583, %v1742
        %v1744 = vpop.f32.mrb[0].mxu0
        %v1745 = vadd.f32 %v1583, %v1744
        %v1746 = vpop.f32.mrb[0].mxu0
        %v1747 = vadd.f32 %v1588, %v1746
        %v1748 = vpop.f32.mrb[0].mxu0
        %v1749 = vadd.f32 %v1588, %v1748
        %1750 = vmatprep.mubr.bf16.mxu0 0
        %1751 = vmatmul.mubr.bf16.gmra.mrb[0].mxu0 %v1657
        %v1752 = vpop.f32.mrb[0].mxu0
        %v1753 = vadd.f32 %v1593, %v1752
        %v1754 = vpop.f32.mrb[0].mxu0
        %v1755 = vadd.f32 %v1593, %v1754
        %v1756 = vpop.f32.mrb[0].mxu0
        %v1757 = vadd.f32 %v1598, %v1756
        %v1758 = vpop.f32.mrb[0].mxu0
        %v1759 = vadd.f32 %v1598, %v1758
        %1760 = vmatprep.mubr.bf16.mxu0 0
        %1761 = vmatmul.mubr.bf16.gmra.mrb[0].mxu0 %v1658
        %v1762 = vpop.f32.mrb[0].mxu0
        %v1763 = vadd.f32 %v1603, %v1762
        %v1764 = vpop.f32.mrb[0].mxu0
        %v1765 = vadd.f32 %v1603, %v1764
        %v1766 = vpop.f32.mrb[0].mxu0
        %v1767 = vadd.f32 %v1608, %v1766
        %v1768 = vpop.f32.mrb[0].mxu0
        %v1769 = vadd.f32 %v1608, %v1768
        %1770 = vmatprep.mubr.bf16.mxu0 0
        %1771 = vmatmul.mubr.bf16.gmra.mrb[0].mxu0 %v1659
        %v1772 = vpop.f32.mrb[0].mxu0
        %v1773 = vadd.f32 %v1613, %v1772
        %v1774 = vpop.f32.mrb[0].mxu0
        %v1775 = vadd.f32 %v1613, %v1774
        %v1776 = vpop.f32.mrb[0].mxu0
        %v1777 = vadd.f32 %v1618, %v1776
        %v1778 = vpop.f32.mrb[0].mxu0
        %v1779 = vadd.f32 %v1618, %v1778
        %1780 = vdwg.mxu0
        %v1781 = vmax.f32 %v1703, 0.0
        %v1782 = vmax.f32 %v1705, 0.0
        %v1783 = vmax.f32 %v1707, 0.0
        %v1784 = vmax.f32 %v1709, 0.0
        %v1785 = vmax.f32 %v1713, 0.0
        %v1786 = vmax.f32 %v1715, 0.0
        %v1787 = vmax.f32 %v1717, 0.0
        %v1788 = vmax.f32 %v1719, 0.0
        %v1789 = vmax.f32 %v1723, 0.0
        %v1790 = vmax.f32 %v1725, 0.0
        %v1791 = vmax.f32 %v1727, 0.0
        %v1792 = vmax.f32 %v1729, 0.0
        %v1793 = vmax.f32 %v1733, 0.0
        %v1794 = vmax.f32 %v1735, 0.0
        %v1795 = vmax.f32 %v1737, 0.0
        %v1796 = vmax.f32 %v1739, 0.0
        %v1797 = vmax.f32 %v1743, 0.0
        %v1798 = vmax.f32 %v1745, 0.0
        %v1799 = vmax.f32 %v1747, 0.0
        %v1800 = vmax.f32 %v1749, 0.0
        %v1801 = vmax.f32 %v1753, 0.0
        %v1802 = vmax.f32 %v1755, 0.0
        %v1803 = vmax.f32 %v1757, 0.0
        %v1804 = vmax.f32 %v1759, 0.0
        %v1805 = vmax.f32 %v1763, 0.0
        %v1806 = vmax.f32 %v1765, 0.0
        %v1807 = vmax.f32 %v1767, 0.0
        %v1808 = vmax.f32 %v1769, 0.0
        %v1809 = vmax.f32 %v1773, 0.0
        %v1810 = vmax.f32 %v1775, 0.0
        %v1811 = vmax.f32 %v1777, 0.0
        %v1812 = vmax.f32 %v1779, 0.0
        %v1813 = vld [vmem:[%s8] sm:$0x1]
        %v1814 = vpack.c.bf16 %v1783, %v1781
        %v1815 = vpack.c.bf16 %v1784, %v1782
        %v1816 = vpack.c.bf16 %v1787, %v1785
        %v1817 = vpack.c.bf16 %v1788, %v1786
        %v1818 = vpack.c.bf16 %v1791, %v1789
        %v1819 = vpack.c.bf16 %v1792, %v1790
        %v1820 = vpack.c.bf16 %v1795, %v1793
        %v1821 = vpack.c.bf16 %v1796, %v1794
        %v1822 = vpack.c.bf16 %v1799, %v1797
        %v1823 = vpack.c.bf16 %v1800, %v1798
        %v1824 = vpack.c.bf16 %v1803, %v1801
        %v1825 = vpack.c.bf16 %v1804, %v1802
        %v1826 = vpack.c.bf16 %v1807, %v1805
        %v1827 = vpack.c.bf16 %v1808, %v1806
        %v1828 = vpack.c.bf16 %v1811, %v1809
        %v1829 = vpack.c.bf16 %v1812, %v1810
        %v1830 = vld [vmem:[#allocation2] sm:$0x1]
        %1832 = vset.pattern.permute.xlu0 0
        %1833 = vperm.xlu0 %1832, %v1830
        %v1834 = vpop.permute.xlu0 %1833
        %v1836 = vlaneseq
        %v1837 = vshrl.u32 %v1836, 7
        %v1838 = vsub.s32 0, %v1837
        %v1839 = vrot.slane %v1834, %v1838
        %1840 = vmatprep.subr.bf16.mxu0 %v1815
        %1841 = vmatpush1.bf16.msra.mxu0 %v1814
        %1842 = vmatprep.subr.bf16.mxu0 %v1817
        %1843 = vmatpush1.bf16.msra.mxu0 %v1816
        %1844 = vmatprep.subr.bf16.mxu0 %v1819
        %1845 = vmatpush1.bf16.msra.mxu0 %v1818
        %1846 = vmatprep.subr.bf16.mxu0 %v1821
        %1847 = vmatpush1.bf16.msra.mxu0 %v1820
        %1848 = vmatprep.subr.bf16.mxu0 %v1823
        %1849 = vmatpush1.bf16.msra.mxu0 %v1822
        %1850 = vmatprep.subr.bf16.mxu0 %v1825
        %1851 = vmatpush1.bf16.msra.mxu0 %v1824
        %1852 = vmatprep.subr.bf16.mxu0 %v1827
        %1853 = vmatpush1.bf16.msra.mxu0 %v1826
        %1854 = vmatprep.subr.bf16.mxu0 %v1829
        %1855 = vmatpush1.bf16.msra.mxu0 %v1828
        %1856 = vmatprep.subr.bf16.mxu0 0
        %1857 = vmatpush1.bf16.msra.mxu0 0
        %1858 = vmatprep.subr.bf16.mxu0 0
        %1859 = vmatpush1.bf16.msra.mxu0 0
        %1860 = vmatprep.subr.bf16.mxu0 0
        %1861 = vmatpush1.bf16.msra.mxu0 0
        %1862 = vmatprep.subr.bf16.mxu0 0
        %1863 = vmatpush1.bf16.msra.mxu0 0
        %1864 = vmatprep.subr.bf16.mxu0 0
        %1865 = vmatpush1.bf16.msra.mxu0 0
        %1866 = vmatprep.subr.bf16.mxu0 0
        %1867 = vmatpush1.bf16.msra.mxu0 0
        %1868 = vmatprep.subr.bf16.mxu0 0
        %1869 = vmatpush1.bf16.msra.mxu0 0
        %1870 = vmatprep.subr.bf16.mxu0 0
        %1871 = vmatpush1.bf16.msra.mxu0 0
        %1872 = vmatprep.mubr.bf16.mxu0 0
        %1873 = vmatmul.mubr.bf16.gmra.mrb[0].mxu0 %v1813
        %v1874 = vpop.f32.mrb[0].mxu0
        %v1875 = vadd.f32 %v1839, %v1874
        %v1876 = vpop.f32.mrb[0].mxu0
        %v1877 = vadd.f32 %v1839, %v1876
        %v1878 = vpop.f32.mrb[0].mxu0
        %v1879 = vpop.f32.mrb[0].mxu0
        %1880 = vdwg.mxu0
        %v1883 = vcombine.low %v1875, %v1877
        %v1885 = vunpack.c.l.s4 1966171168
        %v1886 = vunpack.c.0.s8 %v1885
        %v1887 = vlaneseq
        %v1888 = vshrl.u32 %v1887, 7
        %v1889 = vsub.s32 %v1886, %v1888
        %v1890 = vrot.slane %v1883, %v1889
        %v1892 = vunpack.c.l.s4 1966171168
        %v1893 = vunpack.c.0.s8 %v1892
        %v1894 = vlaneseq
        %v1895 = vshrl.u32 %v1894, 7
        %v1896 = vsub.s32 %v1893, %v1895
        %v1897 = vrot.slane %v1890, %v1896
        %v1899 = vlaneseq
        %vm1900 = vcmp.ge.s32.totalorder %v1899, 0
        %vm1901 = vcmp.lt.s32.totalorder %v1899, 256
        %vm1902 = vmand %vm1900, %vm1901
        %1903 = vst.msk [vmem:[%s391] sm:$0x3] %vm1902, %v1897
        %s1904 = sand.u32 %s251, 1
        %s1905 = sand.u32 %s251, 1
        %s1906 = smul.addr %s1905, 2
        %s1907 = scalar_lea.vmem [#allocation3], %s1906
        // Predicated region
        $region61: #{simple_model_forward.1} parent=59 // pred_check
          %p1908 = pneg %p261
        $region62: #{simple_model_forward.1} parent=59 // pred_check_branch
          %1910 = sbr.rel (%p1908) target = $region64
        $region63: #{simple_model_forward.1} parent=59 // pred_region
          %s1911 = smul.u32 2, %s23
          %s1912 = ssub.s32 3, %s1911
          %p1913 = scmp.lt.s32.totalorder %s1912, 2
          %s1914 = scalar_select %p1913, %s1912, 2
          %s1915 = smul.u32 16, %s1914
          %p1916 = scmp.ne.s32.totalorder 0, %s1915
          %s1917 = scalar_lea.vmem %s10, %s1911
          // Predicated region
          $region65: #{simple_model_forward.1} parent=63 // pred_check
            %p1918 = pneg %p1916
          $region66: #{simple_model_forward.1} parent=63 // pred_check_branch
            %1920 = sbr.rel (%p1918) target = $region68
          $region67: #{simple_model_forward.1} parent=63 // pred_region
            %p1921 = scmp.lt.u32.totalorder %s1914, 8
            %p1922 = pneg %p1921
            // Predicated region
            $region69: #{simple_model_forward.1} parent=67 // pred_check
              _
            $region70: #{simple_model_forward.1} parent=67 // pred_check_branch
              %1924 = sbr.rel (%p1921) target = $region72
            $region71: #{simple_model_forward.1} parent=67 // pred_region
              %s1939 = sand.u32 %s1914, 7
              %p1940 = scmp.eq.s32.totalorder %s1939, 0
              // Predicated region
              $region84: #{simple_model_forward.1} parent=71 // pred_check
                %p1941 = pneg %p1940
              $region85: #{simple_model_forward.1} parent=71 // pred_check_branch
                %1943 = sbr.rel (%p1941) target = $region87
              $region86: #{simple_model_forward.1} parent=71 // pred_region
                %s1944 = sshrl.u32 %s1914, 3
                %s1945 = sshrl.u32 %s1944, 6
                // While loop
                $region88: #{simple_model_forward.1} parent=86 // loop_pre_header
                  _
                $region89: #{simple_model_forward.1} parent=86 // loop_header
                  %s1949 = sphi 0, %s1951
                  %p1950 = scmp.ge.s32.totalorder %s1949, %s1945
                  %s1954 = sphi 0, %s2087
                  %s1955 = sphi %s1907, %s2090
                  %s1956 = sphi %s1917, %s2091
                $region90: #{simple_model_forward.1} parent=86 // loop_header_branch
                  %1953 = sbr.rel (%p1950) target = $region94
                $region91: #{simple_model_forward.1} parent=86 // loop_body
                  %v1957 = vld [vmem:[%s1955] sm:$0xff]
                  %1958 = vst [vmem:[%s1956] sm:$0xff] %v1957
                  %v1959 = vld [vmem:[%s1955 + $0x8] sm:$0xff]
                  %1960 = vst [vmem:[%s1956 + $0x8] sm:$0xff] %v1959
                  %v1961 = vld [vmem:[%s1955 + $0x10] sm:$0xff]
                  %1962 = vst [vmem:[%s1956 + $0x10] sm:$0xff] %v1961
                  %v1963 = vld [vmem:[%s1955 + $0x18] sm:$0xff]
                  %1964 = vst [vmem:[%s1956 + $0x18] sm:$0xff] %v1963
                  %v1965 = vld [vmem:[%s1955 + $0x20] sm:$0xff]
                  %1966 = vst [vmem:[%s1956 + $0x20] sm:$0xff] %v1965
                  %v1967 = vld [vmem:[%s1955 + $0x28] sm:$0xff]
                  %1968 = vst [vmem:[%s1956 + $0x28] sm:$0xff] %v1967
                  %v1969 = vld [vmem:[%s1955 + $0x30] sm:$0xff]
                  %1970 = vst [vmem:[%s1956 + $0x30] sm:$0xff] %v1969
                  %v1971 = vld [vmem:[%s1955 + $0x38] sm:$0xff]
                  %1972 = vst [vmem:[%s1956 + $0x38] sm:$0xff] %v1971
                  %v1973 = vld [vmem:[%s1955 + $0x40] sm:$0xff]
                  %1974 = vst [vmem:[%s1956 + $0x40] sm:$0xff] %v1973
                  %v1975 = vld [vmem:[%s1955 + $0x48] sm:$0xff]
                  %1976 = vst [vmem:[%s1956 + $0x48] sm:$0xff] %v1975
                  %v1977 = vld [vmem:[%s1955 + $0x50] sm:$0xff]
                  %1978 = vst [vmem:[%s1956 + $0x50] sm:$0xff] %v1977
                  %v1979 = vld [vmem:[%s1955 + $0x58] sm:$0xff]
                  %1980 = vst [vmem:[%s1956 + $0x58] sm:$0xff] %v1979
                  %v1981 = vld [vmem:[%s1955 + $0x60] sm:$0xff]
                  %1982 = vst [vmem:[%s1956 + $0x60] sm:$0xff] %v1981
                  %v1983 = vld [vmem:[%s1955 + $0x68] sm:$0xff]
                  %1984 = vst [vmem:[%s1956 + $0x68] sm:$0xff] %v1983
                  %v1985 = vld [vmem:[%s1955 + $0x70] sm:$0xff]
                  %1986 = vst [vmem:[%s1956 + $0x70] sm:$0xff] %v1985
                  %v1987 = vld [vmem:[%s1955 + $0x78] sm:$0xff]
                  %1988 = vst [vmem:[%s1956 + $0x78] sm:$0xff] %v1987
                  %v1989 = vld [vmem:[%s1955 + $0x80] sm:$0xff]
                  %1990 = vst [vmem:[%s1956 + $0x80] sm:$0xff] %v1989
                  %v1991 = vld [vmem:[%s1955 + $0x88] sm:$0xff]
                  %1992 = vst [vmem:[%s1956 + $0x88] sm:$0xff] %v1991
                  %v1993 = vld [vmem:[%s1955 + $0x90] sm:$0xff]
                  %1994 = vst [vmem:[%s1956 + $0x90] sm:$0xff] %v1993
                  %v1995 = vld [vmem:[%s1955 + $0x98] sm:$0xff]
                  %1996 = vst [vmem:[%s1956 + $0x98] sm:$0xff] %v1995
                  %v1997 = vld [vmem:[%s1955 + $0xa0] sm:$0xff]
                  %1998 = vst [vmem:[%s1956 + $0xa0] sm:$0xff] %v1997
                  %v1999 = vld [vmem:[%s1955 + $0xa8] sm:$0xff]
                  %2000 = vst [vmem:[%s1956 + $0xa8] sm:$0xff] %v1999
                  %v2001 = vld [vmem:[%s1955 + $0xb0] sm:$0xff]
                  %2002 = vst [vmem:[%s1956 + $0xb0] sm:$0xff] %v2001
                  %v2003 = vld [vmem:[%s1955 + $0xb8] sm:$0xff]
                  %2004 = vst [vmem:[%s1956 + $0xb8] sm:$0xff] %v2003
                  %v2005 = vld [vmem:[%s1955 + $0xc0] sm:$0xff]
                  %2006 = vst [vmem:[%s1956 + $0xc0] sm:$0xff] %v2005
                  %v2007 = vld [vmem:[%s1955 + $0xc8] sm:$0xff]
                  %2008 = vst [vmem:[%s1956 + $0xc8] sm:$0xff] %v2007
                  %v2009 = vld [vmem:[%s1955 + $0xd0] sm:$0xff]
                  %2010 = vst [vmem:[%s1956 + $0xd0] sm:$0xff] %v2009
                  %v2011 = vld [vmem:[%s1955 + $0xd8] sm:$0xff]
                  %2012 = vst [vmem:[%s1956 + $0xd8] sm:$0xff] %v2011
                  %v2013 = vld [vmem:[%s1955 + $0xe0] sm:$0xff]
                  %2014 = vst [vmem:[%s1956 + $0xe0] sm:$0xff] %v2013
                  %v2015 = vld [vmem:[%s1955 + $0xe8] sm:$0xff]
                  %2016 = vst [vmem:[%s1956 + $0xe8] sm:$0xff] %v2015
                  %v2017 = vld [vmem:[%s1955 + $0xf0] sm:$0xff]
                  %2018 = vst [vmem:[%s1956 + $0xf0] sm:$0xff] %v2017
                  %v2019 = vld [vmem:[%s1955 + $0xf8] sm:$0xff]
                  %2020 = vst [vmem:[%s1956 + $0xf8] sm:$0xff] %v2019
                  %v2021 = vld [vmem:[%s1955 + $0x100] sm:$0xff]
                  %2022 = vst [vmem:[%s1956 + $0x100] sm:$0xff] %v2021
                  %v2023 = vld [vmem:[%s1955 + $0x108] sm:$0xff]
                  %2024 = vst [vmem:[%s1956 + $0x108] sm:$0xff] %v2023
                  %v2025 = vld [vmem:[%s1955 + $0x110] sm:$0xff]
                  %2026 = vst [vmem:[%s1956 + $0x110] sm:$0xff] %v2025
                  %v2027 = vld [vmem:[%s1955 + $0x118] sm:$0xff]
                  %2028 = vst [vmem:[%s1956 + $0x118] sm:$0xff] %v2027
                  %v2029 = vld [vmem:[%s1955 + $0x120] sm:$0xff]
                  %2030 = vst [vmem:[%s1956 + $0x120] sm:$0xff] %v2029
                  %v2031 = vld [vmem:[%s1955 + $0x128] sm:$0xff]
                  %2032 = vst [vmem:[%s1956 + $0x128] sm:$0xff] %v2031
                  %v2033 = vld [vmem:[%s1955 + $0x130] sm:$0xff]
                  %2034 = vst [vmem:[%s1956 + $0x130] sm:$0xff] %v2033
                  %v2035 = vld [vmem:[%s1955 + $0x138] sm:$0xff]
                  %2036 = vst [vmem:[%s1956 + $0x138] sm:$0xff] %v2035
                  %v2037 = vld [vmem:[%s1955 + $0x140] sm:$0xff]
                  %2038 = vst [vmem:[%s1956 + $0x140] sm:$0xff] %v2037
                  %v2039 = vld [vmem:[%s1955 + $0x148] sm:$0xff]
                  %2040 = vst [vmem:[%s1956 + $0x148] sm:$0xff] %v2039
                  %v2041 = vld [vmem:[%s1955 + $0x150] sm:$0xff]
                  %2042 = vst [vmem:[%s1956 + $0x150] sm:$0xff] %v2041
                  %v2043 = vld [vmem:[%s1955 + $0x158] sm:$0xff]
                  %2044 = vst [vmem:[%s1956 + $0x158] sm:$0xff] %v2043
                  %v2045 = vld [vmem:[%s1955 + $0x160] sm:$0xff]
                  %2046 = vst [vmem:[%s1956 + $0x160] sm:$0xff] %v2045
                  %v2047 = vld [vmem:[%s1955 + $0x168] sm:$0xff]
                  %2048 = vst [vmem:[%s1956 + $0x168] sm:$0xff] %v2047
                  %v2049 = vld [vmem:[%s1955 + $0x170] sm:$0xff]
                  %2050 = vst [vmem:[%s1956 + $0x170] sm:$0xff] %v2049
                  %v2051 = vld [vmem:[%s1955 + $0x178] sm:$0xff]
                  %2052 = vst [vmem:[%s1956 + $0x178] sm:$0xff] %v2051
                  %v2053 = vld [vmem:[%s1955 + $0x180] sm:$0xff]
                  %2054 = vst [vmem:[%s1956 + $0x180] sm:$0xff] %v2053
                  %v2055 = vld [vmem:[%s1955 + $0x188] sm:$0xff]
                  %2056 = vst [vmem:[%s1956 + $0x188] sm:$0xff] %v2055
                  %v2057 = vld [vmem:[%s1955 + $0x190] sm:$0xff]
                  %2058 = vst [vmem:[%s1956 + $0x190] sm:$0xff] %v2057
                  %v2059 = vld [vmem:[%s1955 + $0x198] sm:$0xff]
                  %2060 = vst [vmem:[%s1956 + $0x198] sm:$0xff] %v2059
                  %v2061 = vld [vmem:[%s1955 + $0x1a0] sm:$0xff]
                  %2062 = vst [vmem:[%s1956 + $0x1a0] sm:$0xff] %v2061
                  %v2063 = vld [vmem:[%s1955 + $0x1a8] sm:$0xff]
                  %2064 = vst [vmem:[%s1956 + $0x1a8] sm:$0xff] %v2063
                  %v2065 = vld [vmem:[%s1955 + $0x1b0] sm:$0xff]
                  %2066 = vst [vmem:[%s1956 + $0x1b0] sm:$0xff] %v2065
                  %v2067 = vld [vmem:[%s1955 + $0x1b8] sm:$0xff]
                  %2068 = vst [vmem:[%s1956 + $0x1b8] sm:$0xff] %v2067
                  %v2069 = vld [vmem:[%s1955 + $0x1c0] sm:$0xff]
                  %2070 = vst [vmem:[%s1956 + $0x1c0] sm:$0xff] %v2069
                  %v2071 = vld [vmem:[%s1955 + $0x1c8] sm:$0xff]
                  %2072 = vst [vmem:[%s1956 + $0x1c8] sm:$0xff] %v2071
                  %v2073 = vld [vmem:[%s1955 + $0x1d0] sm:$0xff]
                  %2074 = vst [vmem:[%s1956 + $0x1d0] sm:$0xff] %v2073
                  %v2075 = vld [vmem:[%s1955 + $0x1d8] sm:$0xff]
                  %2076 = vst [vmem:[%s1956 + $0x1d8] sm:$0xff] %v2075
                  %v2077 = vld [vmem:[%s1955 + $0x1e0] sm:$0xff]
                  %2078 = vst [vmem:[%s1956 + $0x1e0] sm:$0xff] %v2077
                  %v2079 = vld [vmem:[%s1955 + $0x1e8] sm:$0xff]
                  %2080 = vst [vmem:[%s1956 + $0x1e8] sm:$0xff] %v2079
                  %v2081 = vld [vmem:[%s1955 + $0x1f0] sm:$0xff]
                  %2082 = vst [vmem:[%s1956 + $0x1f0] sm:$0xff] %v2081
                  %v2083 = vld [vmem:[%s1955 + $0x1f8] sm:$0xff]
                  %2084 = vst [vmem:[%s1956 + $0x1f8] sm:$0xff] %v2083
                  %s2085 = sadd.s32 1, %s1954
                  %p2086 = scmp.ge.s32.totalorder %s2085, %s1945
                  %s2087 = scalar_select %p2086, 0, %s2085
                  %s2088 = smul.u32 %s2087, 512
                  %s2089 = smul.u32 %s2087, 512
                  %s2090 = scalar_lea.vmem %s1907, %s2088 [#allocation3]
                  %s2091 = scalar_lea.vmem %s1917, %s2089
                $region92: #{simple_model_forward.1} parent=86 // loop_footer
                  %s1951 = sadd.s32 %s1949, 1
                $region93: #{simple_model_forward.1} parent=86 // loop_footer_branch
                  %1948 = sbr.rel target = $region89
                $region94: #{simple_model_forward.1} parent=86 // loop_exit
                  _
                %s2092 = sshrl.u32 %s1944, 6
                %s2093 = sand.u32 %s1944, 63
                %s2094 = smul.u32 %s2092, 64
                %s2095 = smul.u32 128, %s2094
                %s2096 = sshra.s32 %s2095, 4
                %s2097 = scalar_lea.vmem %s1907, %s2096 [#allocation3]
                %s2098 = smul.u32 128, %s2094
                %s2099 = sshra.s32 %s2098, 4
                %s2100 = scalar_lea.vmem %s1917, %s2099
                // While loop
                $region95: #{simple_model_forward.1} parent=86 // loop_pre_header
                  _
                $region96: #{simple_model_forward.1} parent=86 // loop_header
                  %s2104 = sphi 0, %s2106
                  %p2105 = scmp.ge.s32.totalorder %s2104, %s2093
                  %s2109 = sphi 0, %s2116
                  %s2110 = sphi %s2097, %s2119
                  %s2111 = sphi %s2100, %s2120
                $region97: #{simple_model_forward.1} parent=86 // loop_header_branch
                  %2108 = sbr.rel (%p2105) target = $region101
                $region98: #{simple_model_forward.1} parent=86 // loop_body
                  %v2112 = vld [vmem:[%s2110] sm:$0xff]
                  %2113 = vst [vmem:[%s2111] sm:$0xff] %v2112
                  %s2114 = sadd.s32 1, %s2109
                  %p2115 = scmp.ge.s32.totalorder %s2114, %s2093
                  %s2116 = scalar_select %p2115, 0, %s2114
                  %s2117 = smul.u32 %s2116, 8
                  %s2118 = smul.u32 %s2116, 8
                  %s2119 = scalar_lea.vmem %s2097, %s2117 [#allocation3]
                  %s2120 = scalar_lea.vmem %s2100, %s2118
                $region99: #{simple_model_forward.1} parent=86 // loop_footer
                  %s2106 = sadd.s32 %s2104, 1
                $region100: #{simple_model_forward.1} parent=86 // loop_footer_branch
                  %2103 = sbr.rel target = $region96
                $region101: #{simple_model_forward.1} parent=86 // loop_exit
                  _
              $region87: #{simple_model_forward.1} parent=71 // pred_fallthru
                _
              %p2121 = pneg %p1940
              // Predicated region
              $region102: #{simple_model_forward.1} parent=71 // pred_check
                _
              $region103: #{simple_model_forward.1} parent=71 // pred_check_branch
                %2123 = sbr.rel (%p1940) target = $region105
              $region104: #{simple_model_forward.1} parent=71 // pred_region
                %s2124 = sand.u32 %s1914, 7
                %s2125 = ssub.s32 %s1914, %s2124
                %s2126 = scalar_lea.vmem %s1907, %s2125 [#allocation3]
                %s2127 = ssub.s32 %s1914, %s2124
                %s2128 = scalar_lea.vmem %s1917, %s2127
                %s2129 = sshrl.u32 %s1914, 3
                %s2130 = sshrl.u32 %s2129, 6
                // While loop
                $region106: #{simple_model_forward.1} parent=104 // loop_pre_header
                  _
                $region107: #{simple_model_forward.1} parent=104 // loop_header
                  %s2134 = sphi 0, %s2136
                  %p2135 = scmp.ge.s32.totalorder %s2134, %s2130
                  %s2139 = sphi 0, %s2272
                  %s2140 = sphi %s1907, %s2275
                  %s2141 = sphi %s1917, %s2276
                $region108: #{simple_model_forward.1} parent=104 // loop_header_branch
                  %2138 = sbr.rel (%p2135) target = $region112
                $region109: #{simple_model_forward.1} parent=104 // loop_body
                  %v2142 = vld [vmem:[%s2140] sm:$0xff]
                  %2143 = vst [vmem:[%s2141] sm:$0xff] %v2142
                  %v2144 = vld [vmem:[%s2140 + $0x8] sm:$0xff]
                  %2145 = vst [vmem:[%s2141 + $0x8] sm:$0xff] %v2144
                  %v2146 = vld [vmem:[%s2140 + $0x10] sm:$0xff]
                  %2147 = vst [vmem:[%s2141 + $0x10] sm:$0xff] %v2146
                  %v2148 = vld [vmem:[%s2140 + $0x18] sm:$0xff]
                  %2149 = vst [vmem:[%s2141 + $0x18] sm:$0xff] %v2148
                  %v2150 = vld [vmem:[%s2140 + $0x20] sm:$0xff]
                  %2151 = vst [vmem:[%s2141 + $0x20] sm:$0xff] %v2150
                  %v2152 = vld [vmem:[%s2140 + $0x28] sm:$0xff]
                  %2153 = vst [vmem:[%s2141 + $0x28] sm:$0xff] %v2152
                  %v2154 = vld [vmem:[%s2140 + $0x30] sm:$0xff]
                  %2155 = vst [vmem:[%s2141 + $0x30] sm:$0xff] %v2154
                  %v2156 = vld [vmem:[%s2140 + $0x38] sm:$0xff]
                  %2157 = vst [vmem:[%s2141 + $0x38] sm:$0xff] %v2156
                  %v2158 = vld [vmem:[%s2140 + $0x40] sm:$0xff]
                  %2159 = vst [vmem:[%s2141 + $0x40] sm:$0xff] %v2158
                  %v2160 = vld [vmem:[%s2140 + $0x48] sm:$0xff]
                  %2161 = vst [vmem:[%s2141 + $0x48] sm:$0xff] %v2160
                  %v2162 = vld [vmem:[%s2140 + $0x50] sm:$0xff]
                  %2163 = vst [vmem:[%s2141 + $0x50] sm:$0xff] %v2162
                  %v2164 = vld [vmem:[%s2140 + $0x58] sm:$0xff]
                  %2165 = vst [vmem:[%s2141 + $0x58] sm:$0xff] %v2164
                  %v2166 = vld [vmem:[%s2140 + $0x60] sm:$0xff]
                  %2167 = vst [vmem:[%s2141 + $0x60] sm:$0xff] %v2166
                  %v2168 = vld [vmem:[%s2140 + $0x68] sm:$0xff]
                  %2169 = vst [vmem:[%s2141 + $0x68] sm:$0xff] %v2168
                  %v2170 = vld [vmem:[%s2140 + $0x70] sm:$0xff]
                  %2171 = vst [vmem:[%s2141 + $0x70] sm:$0xff] %v2170
                  %v2172 = vld [vmem:[%s2140 + $0x78] sm:$0xff]
                  %2173 = vst [vmem:[%s2141 + $0x78] sm:$0xff] %v2172
                  %v2174 = vld [vmem:[%s2140 + $0x80] sm:$0xff]
                  %2175 = vst [vmem:[%s2141 + $0x80] sm:$0xff] %v2174
                  %v2176 = vld [vmem:[%s2140 + $0x88] sm:$0xff]
                  %2177 = vst [vmem:[%s2141 + $0x88] sm:$0xff] %v2176
                  %v2178 = vld [vmem:[%s2140 + $0x90] sm:$0xff]
                  %2179 = vst [vmem:[%s2141 + $0x90] sm:$0xff] %v2178
                  %v2180 = vld [vmem:[%s2140 + $0x98] sm:$0xff]
                  %2181 = vst [vmem:[%s2141 + $0x98] sm:$0xff] %v2180
                  %v2182 = vld [vmem:[%s2140 + $0xa0] sm:$0xff]
                  %2183 = vst [vmem:[%s2141 + $0xa0] sm:$0xff] %v2182
                  %v2184 = vld [vmem:[%s2140 + $0xa8] sm:$0xff]
                  %2185 = vst [vmem:[%s2141 + $0xa8] sm:$0xff] %v2184
                  %v2186 = vld [vmem:[%s2140 + $0xb0] sm:$0xff]
                  %2187 = vst [vmem:[%s2141 + $0xb0] sm:$0xff] %v2186
                  %v2188 = vld [vmem:[%s2140 + $0xb8] sm:$0xff]
                  %2189 = vst [vmem:[%s2141 + $0xb8] sm:$0xff] %v2188
                  %v2190 = vld [vmem:[%s2140 + $0xc0] sm:$0xff]
                  %2191 = vst [vmem:[%s2141 + $0xc0] sm:$0xff] %v2190
                  %v2192 = vld [vmem:[%s2140 + $0xc8] sm:$0xff]
                  %2193 = vst [vmem:[%s2141 + $0xc8] sm:$0xff] %v2192
                  %v2194 = vld [vmem:[%s2140 + $0xd0] sm:$0xff]
                  %2195 = vst [vmem:[%s2141 + $0xd0] sm:$0xff] %v2194
                  %v2196 = vld [vmem:[%s2140 + $0xd8] sm:$0xff]
                  %2197 = vst [vmem:[%s2141 + $0xd8] sm:$0xff] %v2196
                  %v2198 = vld [vmem:[%s2140 + $0xe0] sm:$0xff]
                  %2199 = vst [vmem:[%s2141 + $0xe0] sm:$0xff] %v2198
                  %v2200 = vld [vmem:[%s2140 + $0xe8] sm:$0xff]
                  %2201 = vst [vmem:[%s2141 + $0xe8] sm:$0xff] %v2200
                  %v2202 = vld [vmem:[%s2140 + $0xf0] sm:$0xff]
                  %2203 = vst [vmem:[%s2141 + $0xf0] sm:$0xff] %v2202
                  %v2204 = vld [vmem:[%s2140 + $0xf8] sm:$0xff]
                  %2205 = vst [vmem:[%s2141 + $0xf8] sm:$0xff] %v2204
                  %v2206 = vld [vmem:[%s2140 + $0x100] sm:$0xff]
                  %2207 = vst [vmem:[%s2141 + $0x100] sm:$0xff] %v2206
                  %v2208 = vld [vmem:[%s2140 + $0x108] sm:$0xff]
                  %2209 = vst [vmem:[%s2141 + $0x108] sm:$0xff] %v2208
                  %v2210 = vld [vmem:[%s2140 + $0x110] sm:$0xff]
                  %2211 = vst [vmem:[%s2141 + $0x110] sm:$0xff] %v2210
                  %v2212 = vld [vmem:[%s2140 + $0x118] sm:$0xff]
                  %2213 = vst [vmem:[%s2141 + $0x118] sm:$0xff] %v2212
                  %v2214 = vld [vmem:[%s2140 + $0x120] sm:$0xff]
                  %2215 = vst [vmem:[%s2141 + $0x120] sm:$0xff] %v2214
                  %v2216 = vld [vmem:[%s2140 + $0x128] sm:$0xff]
                  %2217 = vst [vmem:[%s2141 + $0x128] sm:$0xff] %v2216
                  %v2218 = vld [vmem:[%s2140 + $0x130] sm:$0xff]
                  %2219 = vst [vmem:[%s2141 + $0x130] sm:$0xff] %v2218
                  %v2220 = vld [vmem:[%s2140 + $0x138] sm:$0xff]
                  %2221 = vst [vmem:[%s2141 + $0x138] sm:$0xff] %v2220
                  %v2222 = vld [vmem:[%s2140 + $0x140] sm:$0xff]
                  %2223 = vst [vmem:[%s2141 + $0x140] sm:$0xff] %v2222
                  %v2224 = vld [vmem:[%s2140 + $0x148] sm:$0xff]
                  %2225 = vst [vmem:[%s2141 + $0x148] sm:$0xff] %v2224
                  %v2226 = vld [vmem:[%s2140 + $0x150] sm:$0xff]
                  %2227 = vst [vmem:[%s2141 + $0x150] sm:$0xff] %v2226
                  %v2228 = vld [vmem:[%s2140 + $0x158] sm:$0xff]
                  %2229 = vst [vmem:[%s2141 + $0x158] sm:$0xff] %v2228
                  %v2230 = vld [vmem:[%s2140 + $0x160] sm:$0xff]
                  %2231 = vst [vmem:[%s2141 + $0x160] sm:$0xff] %v2230
                  %v2232 = vld [vmem:[%s2140 + $0x168] sm:$0xff]
                  %2233 = vst [vmem:[%s2141 + $0x168] sm:$0xff] %v2232
                  %v2234 = vld [vmem:[%s2140 + $0x170] sm:$0xff]
                  %2235 = vst [vmem:[%s2141 + $0x170] sm:$0xff] %v2234
                  %v2236 = vld [vmem:[%s2140 + $0x178] sm:$0xff]
                  %2237 = vst [vmem:[%s2141 + $0x178] sm:$0xff] %v2236
                  %v2238 = vld [vmem:[%s2140 + $0x180] sm:$0xff]
                  %2239 = vst [vmem:[%s2141 + $0x180] sm:$0xff] %v2238
                  %v2240 = vld [vmem:[%s2140 + $0x188] sm:$0xff]
                  %2241 = vst [vmem:[%s2141 + $0x188] sm:$0xff] %v2240
                  %v2242 = vld [vmem:[%s2140 + $0x190] sm:$0xff]
                  %2243 = vst [vmem:[%s2141 + $0x190] sm:$0xff] %v2242
                  %v2244 = vld [vmem:[%s2140 + $0x198] sm:$0xff]
                  %2245 = vst [vmem:[%s2141 + $0x198] sm:$0xff] %v2244
                  %v2246 = vld [vmem:[%s2140 + $0x1a0] sm:$0xff]
                  %2247 = vst [vmem:[%s2141 + $0x1a0] sm:$0xff] %v2246
                  %v2248 = vld [vmem:[%s2140 + $0x1a8] sm:$0xff]
                  %2249 = vst [vmem:[%s2141 + $0x1a8] sm:$0xff] %v2248
                  %v2250 = vld [vmem:[%s2140 + $0x1b0] sm:$0xff]
                  %2251 = vst [vmem:[%s2141 + $0x1b0] sm:$0xff] %v2250
                  %v2252 = vld [vmem:[%s2140 + $0x1b8] sm:$0xff]
                  %2253 = vst [vmem:[%s2141 + $0x1b8] sm:$0xff] %v2252
                  %v2254 = vld [vmem:[%s2140 + $0x1c0] sm:$0xff]
                  %2255 = vst [vmem:[%s2141 + $0x1c0] sm:$0xff] %v2254
                  %v2256 = vld [vmem:[%s2140 + $0x1c8] sm:$0xff]
                  %2257 = vst [vmem:[%s2141 + $0x1c8] sm:$0xff] %v2256
                  %v2258 = vld [vmem:[%s2140 + $0x1d0] sm:$0xff]
                  %2259 = vst [vmem:[%s2141 + $0x1d0] sm:$0xff] %v2258
                  %v2260 = vld [vmem:[%s2140 + $0x1d8] sm:$0xff]
                  %2261 = vst [vmem:[%s2141 + $0x1d8] sm:$0xff] %v2260
                  %v2262 = vld [vmem:[%s2140 + $0x1e0] sm:$0xff]
                  %2263 = vst [vmem:[%s2141 + $0x1e0] sm:$0xff] %v2262
                  %v2264 = vld [vmem:[%s2140 + $0x1e8] sm:$0xff]
                  %2265 = vst [vmem:[%s2141 + $0x1e8] sm:$0xff] %v2264
                  %v2266 = vld [vmem:[%s2140 + $0x1f0] sm:$0xff]
                  %2267 = vst [vmem:[%s2141 + $0x1f0] sm:$0xff] %v2266
                  %v2268 = vld [vmem:[%s2140 + $0x1f8] sm:$0xff]
                  %2269 = vst [vmem:[%s2141 + $0x1f8] sm:$0xff] %v2268
                  %s2270 = sadd.s32 1, %s2139
                  %p2271 = scmp.ge.s32.totalorder %s2270, %s2130
                  %s2272 = scalar_select %p2271, 0, %s2270
                  %s2273 = smul.u32 %s2272, 512
                  %s2274 = smul.u32 %s2272, 512
                  %s2275 = scalar_lea.vmem %s1907, %s2273 [#allocation3]
                  %s2276 = scalar_lea.vmem %s1917, %s2274
                $region110: #{simple_model_forward.1} parent=104 // loop_footer
                  %s2136 = sadd.s32 %s2134, 1
                $region111: #{simple_model_forward.1} parent=104 // loop_footer_branch
                  %2133 = sbr.rel target = $region107
                $region112: #{simple_model_forward.1} parent=104 // loop_exit
                  _
                %s2277 = sshrl.u32 %s2129, 6
                %s2278 = sand.u32 %s2129, 63
                %s2279 = smul.u32 %s2277, 64
                %s2280 = smul.u32 128, %s2279
                %s2281 = sshra.s32 %s2280, 4
                %s2282 = scalar_lea.vmem %s1907, %s2281 [#allocation3]
                %s2283 = smul.u32 128, %s2279
                %s2284 = sshra.s32 %s2283, 4
                %s2285 = scalar_lea.vmem %s1917, %s2284
                // While loop
                $region113: #{simple_model_forward.1} parent=104 // loop_pre_header
                  _
                $region114: #{simple_model_forward.1} parent=104 // loop_header
                  %s2289 = sphi 0, %s2291
                  %p2290 = scmp.ge.s32.totalorder %s2289, %s2278
                  %s2294 = sphi 0, %s2301
                  %s2295 = sphi %s2282, %s2304
                  %s2296 = sphi %s2285, %s2305
                $region115: #{simple_model_forward.1} parent=104 // loop_header_branch
                  %2293 = sbr.rel (%p2290) target = $region119
                $region116: #{simple_model_forward.1} parent=104 // loop_body
                  %v2297 = vld [vmem:[%s2295] sm:$0xff]
                  %2298 = vst [vmem:[%s2296] sm:$0xff] %v2297
                  %s2299 = sadd.s32 1, %s2294
                  %p2300 = scmp.ge.s32.totalorder %s2299, %s2278
                  %s2301 = scalar_select %p2300, 0, %s2299
                  %s2302 = smul.u32 %s2301, 8
                  %s2303 = smul.u32 %s2301, 8
                  %s2304 = scalar_lea.vmem %s2282, %s2302 [#allocation3]
                  %s2305 = scalar_lea.vmem %s2285, %s2303
                $region117: #{simple_model_forward.1} parent=104 // loop_footer
                  %s2291 = sadd.s32 %s2289, 1
                $region118: #{simple_model_forward.1} parent=104 // loop_footer_branch
                  %2288 = sbr.rel target = $region114
                $region119: #{simple_model_forward.1} parent=104 // loop_exit
                  _
                %s2306 = sshllo.u32 0, %s2124
                loop: start=0, step=1, limit=1
                $region120: #{simple_model_forward.1} parent=104 // loop_pre_header
                  _
                $region121: #{simple_model_forward.1} parent=104 // loop_header
                  %s2308 = sphi 0, %s2312
                  %p2309 = scmp.ge.s32.totalorder %s2308, 1
                  %s2313 = sphi %s2126, %s2126
                  %s2314 = sphi %s2128, %s2128
                $region122: #{simple_model_forward.1} parent=104 // loop_header_branch
                  %2311 = sbr.rel (%p2309) target = $region126
                $region123: #{simple_model_forward.1} parent=104 // loop_body
                  %v2315 = vld [vmem:[%s2313] sm:%s2306]
                  %2316 = vst [vmem:[%s2314] sm:%s2306] %v2315
                $region124: #{simple_model_forward.1} parent=104 // loop_footer
                  %s2312 = sadd.s32 1, %s2308
                $region125: #{simple_model_forward.1} parent=104 // loop_footer_branch
                  %2307 = sbr.rel target = $region121
                $region126: #{simple_model_forward.1} parent=104 // loop_exit
                  _
              $region105: #{simple_model_forward.1} parent=71 // pred_fallthru
                _
            $region72: #{simple_model_forward.1} parent=67 // pred_fallthru
              _
            // Predicated region
            $region73: #{simple_model_forward.1} parent=67 // pred_check
              %p1925 = pneg %p1921
            $region74: #{simple_model_forward.1} parent=67 // pred_check_branch
              %1927 = sbr.rel (%p1925) target = $region76
            $region75: #{simple_model_forward.1} parent=67 // pred_region
              %s1928 = sshllo.u32 0, %s1914
              loop: start=0, step=1, limit=1
              $region77: #{simple_model_forward.1} parent=75 // loop_pre_header
                _
              $region78: #{simple_model_forward.1} parent=75 // loop_header
                %s1930 = sphi 0, %s1934
                %p1931 = scmp.ge.s32.totalorder %s1930, 1
                %s1935 = sphi %s1907, %s1907
                %s1936 = sphi %s1917, %s1917
              $region79: #{simple_model_forward.1} parent=75 // loop_header_branch
                %1933 = sbr.rel (%p1931) target = $region83
              $region80: #{simple_model_forward.1} parent=75 // loop_body
                %v1937 = vld [vmem:[%s1935] sm:%s1928]
                %1938 = vst [vmem:[%s1936] sm:%s1928] %v1937
              $region81: #{simple_model_forward.1} parent=75 // loop_footer
                %s1934 = sadd.s32 1, %s1930
              $region82: #{simple_model_forward.1} parent=75 // loop_footer_branch
                %1929 = sbr.rel target = $region78
              $region83: #{simple_model_forward.1} parent=75 // loop_exit
                _
            $region76: #{simple_model_forward.1} parent=67 // pred_fallthru
              _
          $region68: #{simple_model_forward.1} parent=63 // pred_fallthru
            _
          %2317 = vnop
        $region64: #{simple_model_forward.1} parent=59 // pred_fallthru
          _
      $region60: #{simple_model_forward.1} parent=5 // pred_fallthru
        _
      %p2318 = scmp.le.s32.totalorder 2, %s18
      // Predicated region
      $region127: #{simple_model_forward.1} parent=5 // pred_check
        %p2319 = pneg %p2318
      $region128: #{simple_model_forward.1} parent=5 // pred_check_branch
        %2321 = sbr.rel (%p2319) target = $region130
      $region129: #{simple_model_forward.1} parent=5 // pred_region
        %s2322 = ssub.s32 %s18, 2
        // Predicated region
        $region131: #{simple_model_forward.1} parent=129 // pred_check
          %p2323 = pneg %p267
        $region132: #{simple_model_forward.1} parent=129 // pred_check_branch
          %2325 = sbr.rel (%p2323) target = $region134
        $region133: #{simple_model_forward.1} parent=129 // pred_region
          %s2326 = sand.u32 %s252, 1
          %s2327 = sand.u32 %s252, 1
          %s2328 = smul.addr %s2327, 2
          %s2329 = scalar_lea.vmem [#allocation3], %s2328
        $region134: #{simple_model_forward.1} parent=129 // pred_fallthru
          _
      $region130: #{simple_model_forward.1} parent=5 // pred_fallthru
        _
    $region6: #{simple_model_forward.1} parent=1 // loop_footer
      %s22 = sadd.s32 1, %s18
    $region7: #{simple_model_forward.1} parent=1 // loop_footer_branch
      %17 = sbr.rel target = $region3
    $region8: #{simple_model_forward.1} parent=1 // loop_exit
      _

</llo_original>
